<compile_context>
chip_gen: v5e
topology: v5e:2x2
jax: 0.10.0
libtpu: 0.0.40
codegen_flags: <defaults>
</compile_context>

<pallas_src>
import jax
import jax.numpy as jnp
from jax.experimental import pallas as pl
from jax.experimental.pallas import tpu as pltpu

C_IN_SE = 10      # conv2d23 input channels
C_MID   = 240     # conv2d23 output / conv2d24 input channels
C_OUT   = 40      # conv2d24 output channels
H = W = 28
HW = H * W
BN_EPS = 1e-5

KBLK = 120                     # exact K split: 240 = 2 x 120 (multiple of 8)
NKB = C_MID // KBLK            # 2 grid steps
P_ROWS = C_IN_SE + 1 + C_OUT   # 51 packed parameter rows per K block
SUB = 8                        # sublane tile for the BN epilogue


def se_proj_bn_kernel(p_ref, x67_ref, x_ref, gb_ref, out_ref):
    k = pl.program_id(0)

    # Packed parameter block for this K slice (kernel view: [51, 120]).
    w1t_blk = p_ref[0:C_IN_SE, :]               # [10, 120]  conv2d23 weight^T
    b1_blk = p_ref[C_IN_SE:C_IN_SE + 1, :]      # [1, 120]   conv2d23 bias
    w2_blk = p_ref[C_IN_SE + 1:, :]             # [40, 120]  conv2d24 weight

    # conv2d23 (1x1, 10 -> 240) restricted to this K block, then sigmoid gate.
    se = jnp.sum(w1t_blk * x67_ref[...], axis=0, keepdims=True) + b1_blk
    s = jax.nn.sigmoid(se)                      # [1, 120]

    # Fold gate into the projection weight: (W2 diag(s)) X == W2 (diag(s) X),
    # so x64 is touched exactly once -- by the MXU.
    w2s = w2_blk * s                            # [40, 120]

    # conv2d24 (1x1, 240 -> 40, no bias) partial product for this K block.
    partial = jnp.dot(w2s, x_ref[...], preferred_element_type=jnp.float32)

    # out_ref (f32, constant block index -> resident in VMEM) is the accumulator.
    @pl.when(k == 0)
    def _():
        out_ref[...] = partial

    @pl.when(k > 0)
    def _():
        out_ref[...] += partial

    # batchnorm2d14 (training-mode batch stats) epilogue on the last K step,
    # applied per 8-channel sublane tile to keep vreg pressure low.
    @pl.when(k == pl.num_programs(0) - 1)
    def _():
        inv_n = jnp.float32(1.0 / HW)
        for t in range(C_OUT // SUB):
            rows = slice(t * SUB, (t + 1) * SUB)
            xt = out_ref[rows, :]                                   # [8, 784]
            mean = jnp.sum(xt, axis=1, keepdims=True) * inv_n       # [8, 1]
            xc = xt - mean
            var = jnp.sum(xc * xc, axis=1, keepdims=True) * inv_n   # biased var
            scale = gb_ref[rows, 0:1] * jax.lax.rsqrt(var + BN_EPS)
            out_ref[rows, :] = scale * xc + gb_ref[rows, 1:2]
    # TODO(synk): training-mode running-stat (momentum) buffer updates (with
    # unbiased variance) are not emitted.


def pack_params(params):
    """Offline packing (params are static): 4 kernel inputs instead of 7 DMAs."""
    w1, b1, w2, gamma, beta = params
    slab = jnp.concatenate(
        [jnp.transpose(w1).astype(jnp.float32),        # [10, 240]
         b1.reshape(1, C_MID).astype(jnp.float32),     # [1, 240]
         w2.astype(jnp.float32)],                      # [40, 240]
        axis=0)                                        # [51, 240]
    packed = slab.reshape(P_ROWS, NKB, KBLK).transpose(1, 0, 2)   # [2, 51, 120]
    gb = jnp.concatenate(
        [gamma.reshape(C_OUT, 1), beta.reshape(C_OUT, 1)], axis=1
    ).astype(jnp.float32)                              # [40, 2]
    return packed, gb


def m_forward(x67, x64, packed, gb):
    """x67: [1, 10, 1, 1], x64: [1, 240, 28, 28] -> [1, 40, 28, 28]."""
    x67_col = x67.reshape(C_IN_SE, 1).astype(jnp.float32)   # [10, 1]
    x64_cs = x64.reshape(C_MID, HW).astype(jnp.float32)     # [240, 784] (free reshape)

    cost = pl.CostEstimate(
        flops=2 * C_OUT * C_MID * HW + 2 * C_IN_SE * C_MID
        + C_OUT * C_MID + 6 * C_OUT * HW,
        transcendentals=C_MID + C_OUT,                        # sigmoid + rsqrt
        bytes_accessed=(C_MID * HW + C_OUT * HW + NKB * P_ROWS * KBLK
                        + C_IN_SE + 2 * C_OUT) * 4,
    )

    out = pl.pallas_call(
        se_proj_bn_kernel,
        out_shape=jax.ShapeDtypeStruct((C_OUT, HW), jnp.float32),
        grid_spec=pltpu.PrefetchScalarGridSpec(
            num_scalar_prefetch=0,
            grid=(NKB,),
            in_specs=[
                # packed weights: one [51, 120] slice per K block
                pl.BlockSpec((None, P_ROWS, KBLK), lambda k: (k, 0, 0)),
                # x67 column: resident (constant block index)
                pl.BlockSpec((C_IN_SE, 1), lambda k: (0, 0)),
                # x64: K-blocked, double-buffered by the pipeline
                pl.BlockSpec((KBLK, HW), lambda k: (k, 0)),
                # gamma/beta: resident
                pl.BlockSpec((C_OUT, 2), lambda k: (0, 0)),
            ],
            # constant output block index -> resident accumulator, written back once
            out_specs=pl.BlockSpec((C_OUT, HW), lambda k: (0, 0)),
        ),
        compiler_params=pltpu.CompilerParams(
            dimension_semantics=("arbitrary",)),
        cost_estimate=cost,
    )(packed, x67_col, x64_cs, gb)

    return out.reshape(1, C_OUT, H, W)


def init_params(key):
    k1, k2, k3, k4, k5 = jax.random.split(key, 5)
    w1 = jax.random.normal(k1, (C_MID, C_IN_SE), jnp.float32) * 0.1     # conv2d23 weight
    b1 = jax.random.normal(k2, (C_MID, 1), jnp.float32) * 0.1           # conv2d23 bias
    w2 = jax.random.normal(k3, (C_OUT, C_MID), jnp.float32) * 0.05      # conv2d24 weight
    gamma = 1.0 + 0.1 * jax.random.normal(k4, (C_OUT, 1), jnp.float32)  # BN weight
    beta = 0.1 * jax.random.normal(k5, (C_OUT, 1), jnp.float32)         # BN bias
    return w1, b1, w2, gamma, beta


def reference_forward(x67, x64, params):
    """Pure-JAX reference mirroring the PyTorch module (training-mode BN)."""
    w1, b1, w2, gamma, beta = params
    x67v = x67.reshape(C_IN_SE)
    x68 = w1 @ x67v + b1[:, 0]                    # [240]
    x69 = jax.nn.sigmoid(x68)
    x70 = x69[None, :, None, None] * x64          # [1, 240, 28, 28]
    x71 = jnp.einsum('oc,nchw->nohw', w2, x70)    # [1, 40, 28, 28]
    mean = x71.mean(axis=(0, 2, 3), keepdims=True)
    var = ((x71 - mean) ** 2).mean(axis=(0, 2, 3), keepdims=True)
    xhat = (x71 - mean) * jax.lax.rsqrt(var + BN_EPS)
    return gamma[None, :, :, None] * xhat + beta[None, :, :, None]


if __name__ == "__main__":
    key = jax.random.PRNGKey(0)
    kx1, kx2, kp = jax.random.split(key, 3)
    x67 = jax.random.normal(kx1, (1, C_IN_SE, 1, 1), jnp.float32)
    x64 = jax.random.normal(kx2, (1, C_MID, H, W), jnp.float32)
    params = init_params(kp)
    packed, gb = pack_params(params)   # done once, outside the hot path

    out = m_forward(x67, x64, packed, gb)
    out = jax.block_until_ready(out)

    ref = reference_forward(x67, x64, params)
    assert out.shape == (1, C_OUT, H, W)
    assert jnp.allclose(out, ref, atol=1e-4, rtol=1e-4), "mismatch vs reference"
    print("KERNEL_OK")
</pallas_src>

<mosaic_0001>
module attributes {stable_mosaic.version = 11 : i64} {
  func.func @se_proj_bn_kernel(%arg0: i32, %arg1: memref<1x51x120xf32, #tpu.memory_space<vmem>>, %arg2: memref<10x1xf32, #tpu.memory_space<vmem>>, %arg3: memref<120x784xf32, #tpu.memory_space<vmem>>, %arg4: memref<40x2xf32, #tpu.memory_space<vmem>>, %arg5: memref<40x784xf32, #tpu.memory_space<vmem>>) attributes {dimension_semantics = [#tpu.dimension_semantics<arbitrary>], iteration_bounds = array<i64: 2>, scalar_prefetch = 0 : i64, scratch_operands = 0 : i64, tpu.core_type = #tpu.core_type<tc>, window_params = [{transform_indices = @transform_0, window_bounds = array<i64: 1, 51, 120>}, {pipeline_mode = #tpu.pipeline_mode<synchronous>, transform_indices = @transform_1, window_bounds = array<i64: 10, 1>}, {transform_indices = @transform_2, window_bounds = array<i64: 120, 784>}, {pipeline_mode = #tpu.pipeline_mode<synchronous>, transform_indices = @transform_3, window_bounds = array<i64: 40, 2>}, {pipeline_mode = #tpu.pipeline_mode<synchronous>, transform_indices = @transform_4, window_bounds = array<i64: 40, 784>}]} {
    %c0 = arith.constant 0 : index
    %c0_0 = arith.constant 0 : index
    %c0_1 = arith.constant 0 : index
    %0 = vector.load %arg1[%c0, %c0_0, %c0_1] : memref<1x51x120xf32, #tpu.memory_space<vmem>>, vector<1x10x120xf32>
    %1 = vector.shape_cast %0 : vector<1x10x120xf32> to vector<10x120xf32>
    %c0_2 = arith.constant 0 : index
    %c10 = arith.constant 10 : index
    %c0_3 = arith.constant 0 : index
    %2 = vector.load %arg1[%c0_2, %c10, %c0_3] : memref<1x51x120xf32, #tpu.memory_space<vmem>>, vector<1x1x120xf32>
    %3 = vector.shape_cast %2 : vector<1x1x120xf32> to vector<1x120xf32>
    %c0_4 = arith.constant 0 : index
    %c11 = arith.constant 11 : index
    %c0_5 = arith.constant 0 : index
    %4 = vector.load %arg1[%c0_4, %c11, %c0_5] : memref<1x51x120xf32, #tpu.memory_space<vmem>>, vector<1x40x120xf32>
    %5 = vector.shape_cast %4 : vector<1x40x120xf32> to vector<40x120xf32>
    %c0_6 = arith.constant 0 : index
    %c0_7 = arith.constant 0 : index
    %6 = vector.load %arg2[%c0_6, %c0_7] : memref<10x1xf32, #tpu.memory_space<vmem>>, vector<10x1xf32>
    %7 = vector.broadcast %6 : vector<10x1xf32> to vector<10x120xf32>
    %8 = arith.mulf %1, %7 : vector<10x120xf32>
    %cst = arith.constant dense<0.000000e+00> : vector<120xf32>
    %9 = vector.multi_reduction <add>, %8, %cst [0] : vector<10x120xf32> to vector<120xf32>
    %10 = vector.shape_cast %9 : vector<120xf32> to vector<1x120xf32>
    %11 = arith.addf %10, %3 : vector<1x120xf32>
    %12 = arith.negf %11 : vector<1x120xf32>
    %13 = math.exp %12 : vector<1x120xf32>
    %cst_8 = arith.constant 1.000000e+00 : f32
    %14 = vector.broadcast %cst_8 : f32 to vector<1x120xf32>
    %15 = arith.addf %14, %13 : vector<1x120xf32>
    %16 = arith.divf %14, %15 : vector<1x120xf32>
    %17 = vector.broadcast %16 : vector<1x120xf32> to vector<40x120xf32>
    %18 = arith.mulf %5, %17 : vector<40x120xf32>
    %c0_9 = arith.constant 0 : index
    %c0_10 = arith.constant 0 : index
    %19 = vector.load %arg3[%c0_9, %c0_10] : memref<120x784xf32, #tpu.memory_space<vmem>>, vector<120x784xf32>
    %cst_11 = arith.constant dense<0.000000e+00> : vector<40x784xf32>
    %20 = tpu.matmul %18, %19, %cst_11 {dimension_numbers = #tpu.dot_dimension_numbers<[1], [0], [0], [1], [0, 0, 1, 1], [], []>} : vector<40x120xf32>, vector<120x784xf32>, vector<40x784xf32> -> vector<40x784xf32>
    %c0_i32 = arith.constant 0 : i32
    %21 = arith.cmpi eq, %arg0, %c0_i32 : i32
    %22 = arith.extui %21 : i1 to i32
    %c0_i32_12 = arith.constant 0 : i32
    %23 = arith.cmpi ne, %22, %c0_i32_12 : i32
    scf.if %23 {
      %c0_16 = arith.constant 0 : index
      %c0_17 = arith.constant 0 : index
      %30 = vector.load %arg5[%c0_16, %c0_17] : memref<40x784xf32, #tpu.memory_space<vmem>>, vector<40x784xf32>
      tpu.vector_store %arg5[%c0_16, %c0_17], %20 {strides = array<i32>} : memref<40x784xf32, #tpu.memory_space<vmem>>, vector<40x784xf32>,
    } else {
    }
    %c0_i32_13 = arith.constant 0 : i32
    %24 = arith.cmpi sgt, %arg0, %c0_i32_13 : i32
    %25 = arith.extui %24 : i1 to i32
    %c0_i32_14 = arith.constant 0 : i32
    %26 = arith.cmpi ne, %25, %c0_i32_14 : i32
    scf.if %26 {
      %c0_16 = arith.constant 0 : index
      %c0_17 = arith.constant 0 : index
      %30 = vector.load %arg5[%c0_16, %c0_17] : memref<40x784xf32, #tpu.memory_space<vmem>>, vector<40x784xf32>
      %31 = arith.addf %30, %20 : vector<40x784xf32>
      %c0_18 = arith.constant 0 : index
      %c0_19 = arith.constant 0 : index
      %32 = vector.load %arg5[%c0_18, %c0_19] : memref<40x784xf32, #tpu.memory_space<vmem>>, vector<40x784xf32>
      tpu.vector_store %arg5[%c0_18, %c0_19], %31 {strides = array<i32>} : memref<40x784xf32, #tpu.memory_space<vmem>>, vector<40x784xf32>,
    } else {
    }
    %c1_i32 = arith.constant 1 : i32
    %27 = arith.cmpi eq, %arg0, %c1_i32 : i32
    %28 = arith.extui %27 : i1 to i32
    %c0_i32_15 = arith.constant 0 : i32
    %29 = arith.cmpi ne, %28, %c0_i32_15 : i32
    scf.if %29 {
      %c0_16 = arith.constant 0 : index
      %c0_17 = arith.constant 0 : index
      %30 = vector.load %arg5[%c0_16, %c0_17] : memref<40x784xf32, #tpu.memory_space<vmem>>, vector<8x784xf32>
      %cst_18 = arith.constant dense<0.000000e+00> : vector<8xf32>
      %31 = vector.multi_reduction <add>, %30, %cst_18 [1] : vector<8x784xf32> to vector<8xf32>
      %32 = vector.shape_cast %31 : vector<8xf32> to vector<8x1xf32>
      %cst_19 = arith.constant 0.00127551018 : f32
      %33 = vector.broadcast %cst_19 : f32 to vector<8x1xf32>
      %34 = arith.mulf %32, %33 : vector<8x1xf32>
      %35 = vector.broadcast %34 : vector<8x1xf32> to vector<8x784xf32>
      %36 = arith.subf %30, %35 : vector<8x784xf32>
      %37 = arith.mulf %36, %36 : vector<8x784xf32>
      %cst_20 = arith.constant dense<0.000000e+00> : vector<8xf32>
      %38 = vector.multi_reduction <add>, %37, %cst_20 [1] : vector<8x784xf32> to vector<8xf32>
      %39 = vector.shape_cast %38 : vector<8xf32> to vector<8x1xf32>
      %cst_21 = arith.constant 0.00127551018 : f32
      %40 = vector.broadcast %cst_21 : f32 to vector<8x1xf32>
      %41 = arith.mulf %39, %40 : vector<8x1xf32>
      %c0_22 = arith.constant 0 : index
      %c0_23 = arith.constant 0 : index
      %42 = vector.load %arg4[%c0_22, %c0_23] : memref<40x2xf32, #tpu.memory_space<vmem>>, vector<8x1xf32>
      %cst_24 = arith.constant 9.99999974E-6 : f32
      %43 = vector.broadcast %cst_24 : f32 to vector<8x1xf32>
      %44 = arith.addf %41, %43 : vector<8x1xf32>
      %45 = math.rsqrt %44 : vector<8x1xf32>
      %46 = arith.mulf %42, %45 : vector<8x1xf32>
      %47 = vector.broadcast %46 : vector<8x1xf32> to vector<8x784xf32>
      %48 = arith.mulf %47, %36 : vector<8x784xf32>
      %c0_25 = arith.constant 0 : index
      %c1 = arith.constant 1 : index
      %49 = vector.load %arg4[%c0_25, %c1] : memref<40x2xf32, #tpu.memory_space<vmem>>, vector<8x1xf32>
      %50 = vector.broadcast %49 : vector<8x1xf32> to vector<8x784xf32>
      %51 = arith.addf %48, %50 : vector<8x784xf32>
      %c0_26 = arith.constant 0 : index
      %c0_27 = arith.constant 0 : index
      %52 = vector.load %arg5[%c0_26, %c0_27] : memref<40x784xf32, #tpu.memory_space<vmem>>, vector<8x784xf32>
      tpu.vector_store %arg5[%c0_26, %c0_27], %51 {strides = array<i32>} : memref<40x784xf32, #tpu.memory_space<vmem>>, vector<8x784xf32>,
      %c8 = arith.constant 8 : index
      %c0_28 = arith.constant 0 : index
      %53 = vector.load %arg5[%c8, %c0_28] : memref<40x784xf32, #tpu.memory_space<vmem>>, vector<8x784xf32>
      %cst_29 = arith.constant dense<0.000000e+00> : vector<8xf32>
      %54 = vector.multi_reduction <add>, %53, %cst_29 [1] : vector<8x784xf32> to vector<8xf32>
      %55 = vector.shape_cast %54 : vector<8xf32> to vector<8x1xf32>
      %cst_30 = arith.constant 0.00127551018 : f32
      %56 = vector.broadcast %cst_30 : f32 to vector<8x1xf32>
      %57 = arith.mulf %55, %56 : vector<8x1xf32>
      %58 = vector.broadcast %57 : vector<8x1xf32> to vector<8x784xf32>
      %59 = arith.subf %53, %58 : vector<8x784xf32>
      %60 = arith.mulf %59, %59 : vector<8x784xf32>
      %cst_31 = arith.constant dense<0.000000e+00> : vector<8xf32>
      %61 = vector.multi_reduction <add>, %60, %cst_31 [1] : vector<8x784xf32> to vector<8xf32>
      %62 = vector.shape_cast %61 : vector<8xf32> to vector<8x1xf32>
      %cst_32 = arith.constant 0.00127551018 : f32
      %63 = vector.broadcast %cst_32 : f32 to vector<8x1xf32>
      %64 = arith.mulf %62, %63 : vector<8x1xf32>
      %c8_33 = arith.constant 8 : index
      %c0_34 = arith.constant 0 : index
      %65 = vector.load %arg4[%c8_33, %c0_34] : memref<40x2xf32, #tpu.memory_space<vmem>>, vector<8x1xf32>
      %cst_35 = arith.constant 9.99999974E-6 : f32
      %66 = vector.broadcast %cst_35 : f32 to vector<8x1xf32>
      %67 = arith.addf %64, %66 : vector<8x1xf32>
      %68 = math.rsqrt %67 : vector<8x1xf32>
      %69 = arith.mulf %65, %68 : vector<8x1xf32>
      %70 = vector.broadcast %69 : vector<8x1xf32> to vector<8x784xf32>
      %71 = arith.mulf %70, %59 : vector<8x784xf32>
      %c8_36 = arith.constant 8 : index
      %c1_37 = arith.constant 1 : index
      %72 = vector.load %arg4[%c8_36, %c1_37] : memref<40x2xf32, #tpu.memory_space<vmem>>, vector<8x1xf32>
      %73 = vector.broadcast %72 : vector<8x1xf32> to vector<8x784xf32>
      %74 = arith.addf %71, %73 : vector<8x784xf32>
      %c8_38 = arith.constant 8 : index
      %c0_39 = arith.constant 0 : index
      %75 = vector.load %arg5[%c8_38, %c0_39] : memref<40x784xf32, #tpu.memory_space<vmem>>, vector<8x784xf32>
      tpu.vector_store %arg5[%c8_38, %c0_39], %74 {strides = array<i32>} : memref<40x784xf32, #tpu.memory_space<vmem>>, vector<8x784xf32>,
      %c16 = arith.constant 16 : index
      %c0_40 = arith.constant 0 : index
      %76 = vector.load %arg5[%c16, %c0_40] : memref<40x784xf32, #tpu.memory_space<vmem>>, vector<8x784xf32>
      %cst_41 = arith.constant dense<0.000000e+00> : vector<8xf32>
      %77 = vector.multi_reduction <add>, %76, %cst_41 [1] : vector<8x784xf32> to vector<8xf32>
      %78 = vector.shape_cast %77 : vector<8xf32> to vector<8x1xf32>
      %cst_42 = arith.constant 0.00127551018 : f32
      %79 = vector.broadcast %cst_42 : f32 to vector<8x1xf32>
      %80 = arith.mulf %78, %79 : vector<8x1xf32>
      %81 = vector.broadcast %80 : vector<8x1xf32> to vector<8x784xf32>
      %82 = arith.subf %76, %81 : vector<8x784xf32>
      %83 = arith.mulf %82, %82 : vector<8x784xf32>
      %cst_43 = arith.constant dense<0.000000e+00> : vector<8xf32>
      %84 = vector.multi_reduction <add>, %83, %cst_43 [1] : vector<8x784xf32> to vector<8xf32>
      %85 = vector.shape_cast %84 : vector<8xf32> to vector<8x1xf32>
      %cst_44 = arith.constant 0.00127551018 : f32
      %86 = vector.broadcast %cst_44 : f32 to vector<8x1xf32>
      %87 = arith.mulf %85, %86 : vector<8x1xf32>
      %c16_45 = arith.constant 16 : index
      %c0_46 = arith.constant 0 : index
      %88 = vector.load %arg4[%c16_45, %c0_46] : memref<40x2xf32, #tpu.memory_space<vmem>>, vector<8x1xf32>
      %cst_47 = arith.constant 9.99999974E-6 : f32
      %89 = vector.broadcast %cst_47 : f32 to vector<8x1xf32>
      %90 = arith.addf %87, %89 : vector<8x1xf32>
      %91 = math.rsqrt %90 : vector<8x1xf32>
      %92 = arith.mulf %88, %91 : vector<8x1xf32>
      %93 = vector.broadcast %92 : vector<8x1xf32> to vector<8x784xf32>
      %94 = arith.mulf %93, %82 : vector<8x784xf32>
      %c16_48 = arith.constant 16 : index
      %c1_49 = arith.constant 1 : index
      %95 = vector.load %arg4[%c16_48, %c1_49] : memref<40x2xf32, #tpu.memory_space<vmem>>, vector<8x1xf32>
      %96 = vector.broadcast %95 : vector<8x1xf32> to vector<8x784xf32>
      %97 = arith.addf %94, %96 : vector<8x784xf32>
      %c16_50 = arith.constant 16 : index
      %c0_51 = arith.constant 0 : index
      %98 = vector.load %arg5[%c16_50, %c0_51] : memref<40x784xf32, #tpu.memory_space<vmem>>, vector<8x784xf32>
      tpu.vector_store %arg5[%c16_50, %c0_51], %97 {strides = array<i32>} : memref<40x784xf32, #tpu.memory_space<vmem>>, vector<8x784xf32>,
      %c24 = arith.constant 24 : index
      %c0_52 = arith.constant 0 : index
      %99 = vector.load %arg5[%c24, %c0_52] : memref<40x784xf32, #tpu.memory_space<vmem>>, vector<8x784xf32>
      %cst_53 = arith.constant dense<0.000000e+00> : vector<8xf32>
      %100 = vector.multi_reduction <add>, %99, %cst_53 [1] : vector<8x784xf32> to vector<8xf32>
      %101 = vector.shape_cast %100 : vector<8xf32> to vector<8x1xf32>
      %cst_54 = arith.constant 0.00127551018 : f32
      %102 = vector.broadcast %cst_54 : f32 to vector<8x1xf32>
      %103 = arith.mulf %101, %102 : vector<8x1xf32>
      %104 = vector.broadcast %103 : vector<8x1xf32> to vector<8x784xf32>
      %105 = arith.subf %99, %104 : vector<8x784xf32>
      %106 = arith.mulf %105, %105 : vector<8x784xf32>
      %cst_55 = arith.constant dense<0.000000e+00> : vector<8xf32>
      %107 = vector.multi_reduction <add>, %106, %cst_55 [1] : vector<8x784xf32> to vector<8xf32>
      %108 = vector.shape_cast %107 : vector<8xf32> to vector<8x1xf32>
      %cst_56 = arith.constant 0.00127551018 : f32
      %109 = vector.broadcast %cst_56 : f32 to vector<8x1xf32>
      %110 = arith.mulf %108, %109 : vector<8x1xf32>
      %c24_57 = arith.constant 24 : index
      %c0_58 = arith.constant 0 : index
      %111 = vector.load %arg4[%c24_57, %c0_58] : memref<40x2xf32, #tpu.memory_space<vmem>>, vector<8x1xf32>
      %cst_59 = arith.constant 9.99999974E-6 : f32
      %112 = vector.broadcast %cst_59 : f32 to vector<8x1xf32>
      %113 = arith.addf %110, %112 : vector<8x1xf32>
      %114 = math.rsqrt %113 : vector<8x1xf32>
      %115 = arith.mulf %111, %114 : vector<8x1xf32>
      %116 = vector.broadcast %115 : vector<8x1xf32> to vector<8x784xf32>
      %117 = arith.mulf %116, %105 : vector<8x784xf32>
      %c24_60 = arith.constant 24 : index
      %c1_61 = arith.constant 1 : index
      %118 = vector.load %arg4[%c24_60, %c1_61] : memref<40x2xf32, #tpu.memory_space<vmem>>, vector<8x1xf32>
      %119 = vector.broadcast %118 : vector<8x1xf32> to vector<8x784xf32>
      %120 = arith.addf %117, %119 : vector<8x784xf32>
      %c24_62 = arith.constant 24 : index
      %c0_63 = arith.constant 0 : index
      %121 = vector.load %arg5[%c24_62, %c0_63] : memref<40x784xf32, #tpu.memory_space<vmem>>, vector<8x784xf32>
      tpu.vector_store %arg5[%c24_62, %c0_63], %120 {strides = array<i32>} : memref<40x784xf32, #tpu.memory_space<vmem>>, vector<8x784xf32>,
      %c32 = arith.constant 32 : index
      %c0_64 = arith.constant 0 : index
      %122 = vector.load %arg5[%c32, %c0_64] : memref<40x784xf32, #tpu.memory_space<vmem>>, vector<8x784xf32>
      %cst_65 = arith.constant dense<0.000000e+00> : vector<8xf32>
      %123 = vector.multi_reduction <add>, %122, %cst_65 [1] : vector<8x784xf32> to vector<8xf32>
      %124 = vector.shape_cast %123 : vector<8xf32> to vector<8x1xf32>
      %cst_66 = arith.constant 0.00127551018 : f32
      %125 = vector.broadcast %cst_66 : f32 to vector<8x1xf32>
      %126 = arith.mulf %124, %125 : vector<8x1xf32>
      %127 = vector.broadcast %126 : vector<8x1xf32> to vector<8x784xf32>
      %128 = arith.subf %122, %127 : vector<8x784xf32>
      %129 = arith.mulf %128, %128 : vector<8x784xf32>
      %cst_67 = arith.constant dense<0.000000e+00> : vector<8xf32>
      %130 = vector.multi_reduction <add>, %129, %cst_67 [1] : vector<8x784xf32> to vector<8xf32>
      %131 = vector.shape_cast %130 : vector<8xf32> to vector<8x1xf32>
      %cst_68 = arith.constant 0.00127551018 : f32
      %132 = vector.broadcast %cst_68 : f32 to vector<8x1xf32>
      %133 = arith.mulf %131, %132 : vector<8x1xf32>
      %c32_69 = arith.constant 32 : index
      %c0_70 = arith.constant 0 : index
      %134 = vector.load %arg4[%c32_69, %c0_70] : memref<40x2xf32, #tpu.memory_space<vmem>>, vector<8x1xf32>
      %cst_71 = arith.constant 9.99999974E-6 : f32
      %135 = vector.broadcast %cst_71 : f32 to vector<8x1xf32>
      %136 = arith.addf %133, %135 : vector<8x1xf32>
      %137 = math.rsqrt %136 : vector<8x1xf32>
      %138 = arith.mulf %134, %137 : vector<8x1xf32>
      %139 = vector.broadcast %138 : vector<8x1xf32> to vector<8x784xf32>
      %140 = arith.mulf %139, %128 : vector<8x784xf32>
      %c32_72 = arith.constant 32 : index
      %c1_73 = arith.constant 1 : index
      %141 = vector.load %arg4[%c32_72, %c1_73] : memref<40x2xf32, #tpu.memory_space<vmem>>, vector<8x1xf32>
      %142 = vector.broadcast %141 : vector<8x1xf32> to vector<8x784xf32>
      %143 = arith.addf %140, %142 : vector<8x784xf32>
      %c32_74 = arith.constant 32 : index
      %c0_75 = arith.constant 0 : index
      %144 = vector.load %arg5[%c32_74, %c0_75] : memref<40x784xf32, #tpu.memory_space<vmem>>, vector<8x784xf32>
      tpu.vector_store %arg5[%c32_74, %c0_75], %143 {strides = array<i32>} : memref<40x784xf32, #tpu.memory_space<vmem>>, vector<8x784xf32>,
    } else {
    }
    return
  }
  func.func @transform_0(%arg0: i32) -> (i32, i32, i32) {
    %c0_i32 = arith.constant 0 : i32
    %c0_i32_0 = arith.constant 0 : i32
    %c0_i32_1 = arith.constant 0 : i32
    return %arg0, %c0_i32, %c0_i32_0 : i32, i32, i32
  }
  func.func @transform_1(%arg0: i32) -> (i32, i32) {
    %c0_i32 = arith.constant 0 : i32
    %c0_i32_0 = arith.constant 0 : i32
    %c0_i32_1 = arith.constant 0 : i32
    return %c0_i32, %c0_i32_0 : i32, i32
  }
  func.func @transform_2(%arg0: i32) -> (i32, i32) {
    %c0_i32 = arith.constant 0 : i32
    %c0_i32_0 = arith.constant 0 : i32
    return %arg0, %c0_i32 : i32, i32
  }
  func.func @transform_3(%arg0: i32) -> (i32, i32) {
    %c0_i32 = arith.constant 0 : i32
    %c0_i32_0 = arith.constant 0 : i32
    %c0_i32_1 = arith.constant 0 : i32
    return %c0_i32, %c0_i32_0 : i32, i32
  }
  func.func @transform_4(%arg0: i32) -> (i32, i32) {
    %c0_i32 = arith.constant 0 : i32
    %c0_i32_0 = arith.constant 0 : i32
    %c0_i32_1 = arith.constant 0 : i32
    return %c0_i32, %c0_i32_0 : i32, i32
  }
}

</mosaic_0001>

<llo_original>
// kernel: tpu_custom_call.1
$region0: #{tpu_custom_call.1}
  #allocation0 [shape = 'u32[]', space=smem, size = 0x4, offset = 0x4, fixed_abs, tag = 'smem constant byte address 0x4 - core index']
  #allocation1 [shape = 'u32[72,128]{1,0:T(1,128)}', space=vmem, size = 0x9000, scoped, tag = 'internal scratch']
  %s0 = inlined_call_operand.vmem [shape: f32[2,51,120], index: 0, kind: input, shape index: {}]
  %s1 = inlined_call_operand.vmem [shape: f32[10,1], index: 1, kind: input, shape index: {}]
  %s2 = inlined_call_operand.vmem [shape: f32[240,784], index: 2, kind: input, shape index: {}]
  %s3 = inlined_call_operand.vmem [shape: f32[40,2], index: 3, kind: input, shape index: {}]
  %s4 = inlined_call_operand.hbm [shape: f32[40,784], index: 4, kind: output, shape index: {}]
  %s5 = sld [smem:[#allocation0]]
  $region61: #{tpu_custom_call.1} parent=0
    _
  %s7 = ssub.s32 1, %s5
  %s8 = scalar_select 0, %s7, %s5
  $region1: #{tpu_custom_call.1} parent=0
    #allocation2 [shape = 'u8[143360]{0}', space=vmem, size = 0x23000, scoped, tag = 'output window, operand 0, single buffered']
    #allocation3 [shape = 's32[2]{0}', space=sflag, size = 0x8, scoped, tag = 'scoped memory for tpu_custom_call.1']
    %9 = vsyncpa [#allocation3], 0
    loop: start=0, step=1, limit=4
    $region2: #{tpu_custom_call.1} parent=1 // loop_pre_header
      _
    $region3: #{tpu_custom_call.1} parent=1 // loop_header
      %s11 = sphi 0, %s15
      %p12 = scmp.ge.s32.totalorder %s11, 4
      %s21 = sphi 0, %s23
      %s24 = sphi 0, %s21
      %s25 = sphi 0, %s24
      %s41 = sphi 0, %s25
      %s45 = sphi 0, %s45
      %s47 = sphi 0, %s45
      %s48 = sphi 0, %s47
      %s62 = sphi 0, %s48
      %s68 = sphi 0, %s70
      %s71 = sphi 0, %s68
      %s72 = sphi 0, %s71
      %s88 = sphi 0, %s72
      %s92 = sphi 0, %s92
      %s94 = sphi 0, %s92
      %s95 = sphi 0, %s94
      %s109 = sphi 0, %s95
      %s113 = sphi 0, %s113
      %s115 = sphi 0, %s113
      %s116 = sphi 0, %s115
      %s130 = sphi 0, %s116
    $region4: #{tpu_custom_call.1} parent=1 // loop_header_branch
      %14 = sbr.rel (%p12) target = $region8
    $region5: #{tpu_custom_call.1} parent=1 // loop_body
      %s16 = ssub.s32 %s11, 1
      %s17 = ssub.s32 %s11, 2
      %s18 = sadd.s32 %s11, 1
      %s19 = ssub.s32 %s11, %s18
      %p20 = scmp.eq.s32.totalorder %s19, 0
      %s22 = sadd.s32 %s21, 1
      %s23 = scalar_select %p20, %s21, %s22
      %p26 = pneg %p20
      %p27 = scmp.eq.s32.totalorder %s11, 1
      %p28 = por %p26, %p27
      %p29 = scmp.ne.s32.totalorder %s21, %s24
      %p30 = scmp.eq.s32.totalorder %s11, 0
      %p31 = por %p29, %p30
      %p32 = scmp.ne.s32.totalorder %s21, %s24
      %p33 = scmp.eq.s32.totalorder %s16, 1
      %p34 = por %p32, %p33
      %p35 = scmp.ne.s32.totalorder %s24, %s25
      %p36 = scmp.eq.s32.totalorder %s16, 0
      %p37 = por %p35, %p36
      %p38 = scmp.ne.s32.totalorder %s24, %s25
      %p39 = scmp.eq.s32.totalorder %s17, 1
      %p40 = por %p38, %p39
      %p42 = scmp.ne.s32.totalorder %s25, %s41
      %p43 = scmp.eq.s32.totalorder %s17, 0
      %p44 = por %p42, %p43
      %s46 = sadd.s32 %s45, 1
      %p49 = scmp.eq.s32.totalorder %s11, 1
      %p50 = scmp.ne.s32.totalorder %s45, %s47
      %p51 = scmp.eq.s32.totalorder %s11, 0
      %p52 = por %p50, %p51
      %p53 = scmp.ne.s32.totalorder %s45, %s47
      %p54 = scmp.eq.s32.totalorder %s16, 1
      %p55 = por %p53, %p54
      %p56 = scmp.ne.s32.totalorder %s47, %s48
      %p57 = scmp.eq.s32.totalorder %s16, 0
      %p58 = por %p56, %p57
      %p59 = scmp.ne.s32.totalorder %s47, %s48
      %p60 = scmp.eq.s32.totalorder %s17, 1
      %p61 = por %p59, %p60
      %p63 = scmp.ne.s32.totalorder %s48, %s62
      %p64 = scmp.eq.s32.totalorder %s17, 0
      %p65 = por %p63, %p64
      %s66 = ssub.s32 %s11, %s18
      %p67 = scmp.eq.s32.totalorder %s66, 0
      %s69 = sadd.s32 %s68, 1
      %s70 = scalar_select %p67, %s68, %s69
      %p73 = pneg %p67
      %p74 = scmp.eq.s32.totalorder %s11, 1
      %p75 = por %p73, %p74
      %p76 = scmp.ne.s32.totalorder %s68, %s71
      %p77 = scmp.eq.s32.totalorder %s11, 0
      %p78 = por %p76, %p77
      %p79 = scmp.ne.s32.totalorder %s68, %s71
      %p80 = scmp.eq.s32.totalorder %s16, 1
      %p81 = por %p79, %p80
      %p82 = scmp.ne.s32.totalorder %s71, %s72
      %p83 = scmp.eq.s32.totalorder %s16, 0
      %p84 = por %p82, %p83
      %p85 = scmp.ne.s32.totalorder %s71, %s72
      %p86 = scmp.eq.s32.totalorder %s17, 1
      %p87 = por %p85, %p86
      %p89 = scmp.ne.s32.totalorder %s72, %s88
      %p90 = scmp.eq.s32.totalorder %s17, 0
      %p91 = por %p89, %p90
      %s93 = sadd.s32 %s92, 1
      %p96 = scmp.eq.s32.totalorder %s11, 1
      %p97 = scmp.ne.s32.totalorder %s92, %s94
      %p98 = scmp.eq.s32.totalorder %s11, 0
      %p99 = por %p97, %p98
      %p100 = scmp.ne.s32.totalorder %s92, %s94
      %p101 = scmp.eq.s32.totalorder %s16, 1
      %p102 = por %p100, %p101
      %p103 = scmp.ne.s32.totalorder %s94, %s95
      %p104 = scmp.eq.s32.totalorder %s16, 0
      %p105 = por %p103, %p104
      %p106 = scmp.ne.s32.totalorder %s94, %s95
      %p107 = scmp.eq.s32.totalorder %s17, 1
      %p108 = por %p106, %p107
      %p110 = scmp.ne.s32.totalorder %s95, %s109
      %p111 = scmp.eq.s32.totalorder %s17, 0
      %p112 = por %p110, %p111
      %s114 = sadd.s32 %s113, 1
      %p117 = scmp.eq.s32.totalorder %s11, 1
      %p118 = scmp.ne.s32.totalorder %s113, %s115
      %p119 = scmp.eq.s32.totalorder %s11, 0
      %p120 = por %p118, %p119
      %p121 = scmp.ne.s32.totalorder %s113, %s115
      %p122 = scmp.eq.s32.totalorder %s16, 1
      %p123 = por %p121, %p122
      %p124 = scmp.ne.s32.totalorder %s115, %s116
      %p125 = scmp.eq.s32.totalorder %s16, 0
      %p126 = por %p124, %p125
      %p127 = scmp.ne.s32.totalorder %s115, %s116
      %p128 = scmp.eq.s32.totalorder %s17, 1
      %p129 = por %p127, %p128
      %p131 = scmp.ne.s32.totalorder %s116, %s130
      %p132 = scmp.eq.s32.totalorder %s17, 0
      %p133 = por %p131, %p132
      %p134 = scmp.le.s32.totalorder 1, %s11
      %p135 = scmp.lt.s32.totalorder %s11, 3
      %p136 = pnand %p134, %p135
      %p137 = pneg %p136
      // Predicated region
      $region9: #{tpu_custom_call.1} parent=5 // pred_check
        _
      $region10: #{tpu_custom_call.1} parent=5 // pred_check_branch
        %139 = sbr.rel (%p136) target = $region12
      $region11: #{tpu_custom_call.1} parent=5 // pred_region
        %s140 = ssub.s32 %s11, 1
        // Predicated region
        $region13: #{tpu_custom_call.1} parent=11 // pred_check
          %p141 = pneg %p58
        $region14: #{tpu_custom_call.1} parent=11 // pred_check_branch
          %143 = sbr.rel (%p141) target = $region16
        $region15: #{tpu_custom_call.1} parent=11 // pred_region
          _
        $region16: #{tpu_custom_call.1} parent=11 // pred_fallthru
          _
        // Predicated region
        $region17: #{tpu_custom_call.1} parent=11 // pred_check
          %p144 = pneg %p105
        $region18: #{tpu_custom_call.1} parent=11 // pred_check_branch
          %146 = sbr.rel (%p144) target = $region20
        $region19: #{tpu_custom_call.1} parent=11 // pred_region
          _
        $region20: #{tpu_custom_call.1} parent=11 // pred_fallthru
          _
      $region12: #{tpu_custom_call.1} parent=5 // pred_fallthru
        _
      %p147 = scmp.lt.s32.totalorder %s11, 2
      // Predicated region
      $region21: #{tpu_custom_call.1} parent=5 // pred_check
        %p148 = pneg %p147
      $region22: #{tpu_custom_call.1} parent=5 // pred_check_branch
        %150 = sbr.rel (%p148) target = $region24
      $region23: #{tpu_custom_call.1} parent=5 // pred_region
        // Predicated region
        $region25: #{tpu_custom_call.1} parent=23 // pred_check
          %p151 = pneg %p31
        $region26: #{tpu_custom_call.1} parent=23 // pred_check_branch
          %153 = sbr.rel (%p151) target = $region28
        $region27: #{tpu_custom_call.1} parent=23 // pred_region
          %p154 = scmp.lt.s32.totalorder %s11, 1
          %s155 = scalar_select %p154, %s11, 1
          %s156 = smul.addr %s155, 7
          %s157 = smul.addr %s156, 8
          %s158 = scalar_lea.vmem %s0, %s157
        $region28: #{tpu_custom_call.1} parent=23 // pred_fallthru
          _
        // Predicated region
        $region29: #{tpu_custom_call.1} parent=23 // pred_check
          %p159 = pneg %p78
        $region30: #{tpu_custom_call.1} parent=23 // pred_check_branch
          %161 = sbr.rel (%p159) target = $region32
        $region31: #{tpu_custom_call.1} parent=23 // pred_region
          %s162 = smul.u32 15, %s11
          %p163 = scmp.lt.s32.totalorder %s162, 29
          %s164 = scalar_select %p163, %s162, 29
          %s165 = smul.addr %s164, 7
          %s166 = smul.addr %s165, 8
          %s167 = scalar_lea.vmem %s2, %s166
          %s168 = smul.u32 15, %s11
        $region32: #{tpu_custom_call.1} parent=23 // pred_fallthru
          _
      $region24: #{tpu_custom_call.1} parent=5 // pred_fallthru
        _
      %p169 = scmp.le.s32.totalorder 1, %s11
      %p170 = scmp.lt.s32.totalorder %s11, 3
      %p171 = pnand %p169, %p170
      %p172 = pneg %p171
      // Predicated region
      $region33: #{tpu_custom_call.1} parent=5 // pred_check
        _
      $region34: #{tpu_custom_call.1} parent=5 // pred_check_branch
        %174 = sbr.rel (%p171) target = $region36
      $region35: #{tpu_custom_call.1} parent=5 // pred_region
        %s175 = ssub.s32 %s11, 1
        %p176 = scmp.lt.s32.totalorder %s16, 1
        %s177 = scalar_select %p176, %s16, 1
        %s178 = smul.addr %s177, 7
        %s179 = smul.addr %s178, 8
        %s180 = scalar_lea.vmem %s0, %s179
        %p181 = pneg %p37
        %p182 = pneg %p34
        %p183 = pneg %p58
        %p184 = pneg %p55
        %s185 = smul.u32 15, %s16
        %p186 = scmp.lt.s32.totalorder %s185, 29
        %s187 = scalar_select %p186, %s185, 29
        %s188 = smul.addr %s187, 7
        %s189 = smul.addr %s188, 8
        %s190 = scalar_lea.vmem %s2, %s189
        %p191 = pneg %p84
        %p192 = pneg %p81
        %p193 = pneg %p105
        %p194 = pneg %p102
        %p195 = pneg %p126
        %p196 = pneg %p123
        %p197 = scmp.lt.s32.totalorder %s16, 1
        %s198 = scalar_select %p197, %s16, 1
        %s199 = smul.addr %s198, 7
        %s200 = smul.addr %s199, 8
        %s201 = scalar_lea.vmem %s0, %s200
        %s202 = smul.u32 15, %s16
        %p203 = scmp.lt.s32.totalorder %s202, 29
        %s204 = scalar_select %p203, %s202, 29
        %s205 = smul.addr %s204, 7
        %s206 = smul.addr %s205, 8
        %s207 = scalar_lea.vmem %s2, %s206
        %s208 = smul.u32 15, %s16
        %v209 = vld [vmem:[%s201] sm:$0xff]
        %v210 = vld [vmem:[%s201 + $0x8] sm:$0x3]
        %v211 = vld [vmem:[%s201 + $0xa] sm:$0x1]
        %v212 = vld [vmem:[%s201 + $0xb] sm:$0xff]
        %v213 = vld [vmem:[%s201 + $0x13] sm:$0xff]
        %v214 = vld [vmem:[%s201 + $0x1b] sm:$0xff]
        %v215 = vld [vmem:[%s201 + $0x23] sm:$0xff]
        %v216 = vld [vmem:[%s201 + $0x2b] sm:$0xff]
        %v217 = vld [vmem:[%s1] sm:$0xff]
        %v218 = vld [vmem:[%s1 + $0x8] sm:$0x3]
        %220 = vset.pattern.permute.xlu0 0
        %221 = vperm.xlu0 %220, %v217
        %v222 = vpop.permute.xlu0 %221
        %225 = vset.pattern.permute.xlu0 0
        %226 = vperm.xlu0 %225, %v218
        %v227 = vpop.permute.xlu0 %226
        %v229 = vmul.f32 %v209, %v222
        %v230 = vmul.f32 %v210, %v227
        %vm231 = vcmask 982016
        %v232 = vsel %vm231, %v229, 0.0
        %vm233 = vcmask 975872
        %v234 = vsel %vm233, %v230, 0.0
        %v235 = vadd.f32 %v232, %v234
        %v236 = vrot.slane %v235, 4
        %v237 = vadd.f32 %v235, %v236
        %v238 = vrot.slane %v237, 2
        %v239 = vadd.f32 %v237, %v238
        %v240 = vrot.slane %v239, 1
        %v241 = vadd.f32 %v239, %v240
        %v242 = vadd.f32 %v241, %v211
        %v243 = vxor.u32 %v242, 2147483648
        %v244 = vmul.f32 %v243, 1.442695
        %v245 = vpow.pop %v244
        %v246 = vadd.f32 %v245, 1.0
        %v247 = vrcp.pop %v246
        %v248 = vmul.f32 %v246, %v247
        %v249 = vsub.f32 1.0, %v248
        %v250 = vmul.f32 %v247, %v249
        %v251 = vadd.f32 %v247, %v250
        %vm252 = vweird.f32 %v246
        %vm253 = vweird.f32 %v247
        %vm254 = vmor %vm252, %vm253
        %v255 = vsel %vm254, %v247, %v251
        %v256 = vand.u32 2147483647, %v246
        %vm257 = vcmp.eq.f32.partialorder %v256, 8.507059e+37
        %v258 = vand.u32 %v246, 2147483648
        %v259 = vor.u32 1.1754944e-38, %v258
        %v260 = vsel %vm257, %v259, %v255
        %v261 = vmul.f32 1.0, %v260
        %v262 = vperm.slane %v261, 0
        %v263 = vmul.f32 %v212, %v262
        %v264 = vmul.f32 %v213, %v262
        %v265 = vmul.f32 %v214, %v262
        %v266 = vmul.f32 %v215, %v262
        %v267 = vmul.f32 %v216, %v262
        %v268 = vld [vmem:[%s207] sm:$0xff]
        %v269 = vld [vmem:[%s207 + $0x8] sm:$0xff]
        %v270 = vld [vmem:[%s207 + $0x10] sm:$0xff]
        %v271 = vld [vmem:[%s207 + $0x18] sm:$0xff]
        %v272 = vld [vmem:[%s207 + $0x20] sm:$0xff]
        %v273 = vld [vmem:[%s207 + $0x28] sm:$0xff]
        %v274 = vld [vmem:[%s207 + $0x30] sm:$0xff]
        %v275 = vld [vmem:[%s207 + $0x38] sm:$0xff]
        %v276 = vld [vmem:[%s207 + $0x40] sm:$0xff]
        %v277 = vld [vmem:[%s207 + $0x48] sm:$0xff]
        %v278 = vld [vmem:[%s207 + $0x50] sm:$0xff]
        %v279 = vld [vmem:[%s207 + $0x58] sm:$0xff]
        %v280 = vld [vmem:[%s207 + $0x60] sm:$0xff]
        %v281 = vld [vmem:[%s207 + $0x68] sm:$0xff]
        %v282 = vld [vmem:[%s207 + $0x70] sm:$0xff]
        %v283 = vld [vmem:[%s207 + $0x78] sm:$0xff]
        %v284 = vld [vmem:[%s207 + $0x80] sm:$0xff]
        %v285 = vld [vmem:[%s207 + $0x88] sm:$0xff]
        %v286 = vld [vmem:[%s207 + $0x90] sm:$0xff]
        %v287 = vld [vmem:[%s207 + $0x98] sm:$0xff]
        %v288 = vld [vmem:[%s207 + $0xa0] sm:$0xff]
        %v289 = vld [vmem:[%s207 + $0xa8] sm:$0xff]
        %v290 = vld [vmem:[%s207 + $0xb0] sm:$0xff]
        %v291 = vld [vmem:[%s207 + $0xb8] sm:$0xff]
        %v292 = vld [vmem:[%s207 + $0xc0] sm:$0xff]
        %v293 = vld [vmem:[%s207 + $0xc8] sm:$0xff]
        %v294 = vld [vmem:[%s207 + $0xd0] sm:$0xff]
        %v295 = vld [vmem:[%s207 + $0xd8] sm:$0xff]
        %v296 = vld [vmem:[%s207 + $0xe0] sm:$0xff]
        %v297 = vld [vmem:[%s207 + $0xe8] sm:$0xff]
        %v298 = vld [vmem:[%s207 + $0xf0] sm:$0xff]
        %v299 = vld [vmem:[%s207 + $0xf8] sm:$0xff]
        %v300 = vld [vmem:[%s207 + $0x100] sm:$0xff]
        %v301 = vld [vmem:[%s207 + $0x108] sm:$0xff]
        %v302 = vld [vmem:[%s207 + $0x110] sm:$0xff]
        %v303 = vld [vmem:[%s207 + $0x118] sm:$0xff]
        %v304 = vld [vmem:[%s207 + $0x120] sm:$0xff]
        %v305 = vld [vmem:[%s207 + $0x128] sm:$0xff]
        %v306 = vld [vmem:[%s207 + $0x130] sm:$0xff]
        %v307 = vld [vmem:[%s207 + $0x138] sm:$0xff]
        %v308 = vld [vmem:[%s207 + $0x140] sm:$0xff]
        %v309 = vld [vmem:[%s207 + $0x148] sm:$0xff]
        %v310 = vld [vmem:[%s207 + $0x150] sm:$0xff]
        %v311 = vld [vmem:[%s207 + $0x158] sm:$0xff]
        %v312 = vld [vmem:[%s207 + $0x160] sm:$0xff]
        %v313 = vld [vmem:[%s207 + $0x168] sm:$0xff]
        %v314 = vld [vmem:[%s207 + $0x170] sm:$0xff]
        %v315 = vld [vmem:[%s207 + $0x178] sm:$0xff]
        %v316 = vld [vmem:[%s207 + $0x180] sm:$0xff]
        %v317 = vld [vmem:[%s207 + $0x188] sm:$0xff]
        %v318 = vld [vmem:[%s207 + $0x190] sm:$0xff]
        %v319 = vld [vmem:[%s207 + $0x198] sm:$0xff]
        %v320 = vld [vmem:[%s207 + $0x1a0] sm:$0xff]
        %v321 = vld [vmem:[%s207 + $0x1a8] sm:$0xff]
        %v322 = vld [vmem:[%s207 + $0x1b0] sm:$0xff]
        %v323 = vld [vmem:[%s207 + $0x1b8] sm:$0xff]
        %v324 = vld [vmem:[%s207 + $0x1c0] sm:$0xff]
        %v325 = vld [vmem:[%s207 + $0x1c8] sm:$0xff]
        %v326 = vld [vmem:[%s207 + $0x1d0] sm:$0xff]
        %v327 = vld [vmem:[%s207 + $0x1d8] sm:$0xff]
        %v328 = vld [vmem:[%s207 + $0x1e0] sm:$0xff]
        %v329 = vld [vmem:[%s207 + $0x1e8] sm:$0xff]
        %v330 = vld [vmem:[%s207 + $0x1f0] sm:$0xff]
        %v331 = vld [vmem:[%s207 + $0x1f8] sm:$0xff]
        %v332 = vld [vmem:[%s207 + $0x200] sm:$0xff]
        %v333 = vld [vmem:[%s207 + $0x208] sm:$0xff]
        %v334 = vld [vmem:[%s207 + $0x210] sm:$0xff]
        %v335 = vld [vmem:[%s207 + $0x218] sm:$0xff]
        %v336 = vld [vmem:[%s207 + $0x220] sm:$0xff]
        %v337 = vld [vmem:[%s207 + $0x228] sm:$0xff]
        %v338 = vld [vmem:[%s207 + $0x230] sm:$0xff]
        %v339 = vld [vmem:[%s207 + $0x238] sm:$0xff]
        %v340 = vld [vmem:[%s207 + $0x240] sm:$0xff]
        %v341 = vld [vmem:[%s207 + $0x248] sm:$0xff]
        %v342 = vld [vmem:[%s207 + $0x250] sm:$0xff]
        %v343 = vld [vmem:[%s207 + $0x258] sm:$0xff]
        %v344 = vld [vmem:[%s207 + $0x260] sm:$0xff]
        %v345 = vld [vmem:[%s207 + $0x268] sm:$0xff]
        %v346 = vld [vmem:[%s207 + $0x270] sm:$0xff]
        %v347 = vld [vmem:[%s207 + $0x278] sm:$0xff]
        %v348 = vld [vmem:[%s207 + $0x280] sm:$0xff]
        %v349 = vld [vmem:[%s207 + $0x288] sm:$0xff]
        %v350 = vld [vmem:[%s207 + $0x290] sm:$0xff]
        %v351 = vld [vmem:[%s207 + $0x298] sm:$0xff]
        %v352 = vld [vmem:[%s207 + $0x2a0] sm:$0xff]
        %v353 = vld [vmem:[%s207 + $0x2a8] sm:$0xff]
        %v354 = vld [vmem:[%s207 + $0x2b0] sm:$0xff]
        %v355 = vld [vmem:[%s207 + $0x2b8] sm:$0xff]
        %v356 = vld [vmem:[%s207 + $0x2c0] sm:$0xff]
        %v357 = vld [vmem:[%s207 + $0x2c8] sm:$0xff]
        %v358 = vld [vmem:[%s207 + $0x2d0] sm:$0xff]
        %v359 = vld [vmem:[%s207 + $0x2d8] sm:$0xff]
        %v360 = vld [vmem:[%s207 + $0x2e0] sm:$0xff]
        %v361 = vld [vmem:[%s207 + $0x2e8] sm:$0xff]
        %v362 = vld [vmem:[%s207 + $0x2f0] sm:$0xff]
        %v363 = vld [vmem:[%s207 + $0x2f8] sm:$0xff]
        %v364 = vld [vmem:[%s207 + $0x300] sm:$0xff]
        %v365 = vld [vmem:[%s207 + $0x308] sm:$0xff]
        %v366 = vld [vmem:[%s207 + $0x310] sm:$0xff]
        %v367 = vld [vmem:[%s207 + $0x318] sm:$0xff]
        %v368 = vld [vmem:[%s207 + $0x320] sm:$0xff]
        %v369 = vld [vmem:[%s207 + $0x328] sm:$0xff]
        %v370 = vld [vmem:[%s207 + $0x330] sm:$0xff]
        %v371 = vld [vmem:[%s207 + $0x338] sm:$0xff]
        %v372 = vld [vmem:[%s207 + $0x340] sm:$0xff]
        %v374 = vsel %vm231, %v263, 0
        %v377 = vsel %vm231, %v264, 0
        %v380 = vsel %vm231, %v265, 0
        %v383 = vsel %vm231, %v266, 0
        %v386 = vsel %vm231, %v267, 0
        %388 = vmatpush.msra.mxu0 0.0
        %389 = vmatpush.msra.mxu0 %v366
        %390 = vmatpush.msra.mxu0 %v359
        %391 = vmatpush.msra.mxu0 %v352
        %392 = vmatpush.msra.mxu0 %v345
        %393 = vmatpush.msra.mxu0 %v338
        %394 = vmatpush.msra.mxu0 %v331
        %395 = vmatpush.msra.mxu0 %v324
        %396 = vmatpush.msra.mxu0 %v317
        %397 = vmatpush.msra.mxu0 %v310
        %398 = vmatpush.msra.mxu0 %v303
        %399 = vmatpush.msra.mxu0 %v296
        %400 = vmatpush.msra.mxu0 %v289
        %401 = vmatpush.msra.mxu0 %v282
        %402 = vmatpush.msra.mxu0 %v275
        %403 = vmatpush.msra.mxu0 %v268
        %404 = vmatmul.f32.gmra.mxu0 %v374
        %v405 = vpop.f32.mrf.mxu0
        %v406 = vadd.f32 0.0, %v405
        %407 = vmatmul.f32.gmra.mxu0 %v377
        %v408 = vpop.f32.mrf.mxu0
        %v409 = vadd.f32 0.0, %v408
        %410 = vmatmul.f32.gmra.mxu0 %v380
        %v411 = vpop.f32.mrf.mxu0
        %v412 = vadd.f32 0.0, %v411
        %413 = vmatmul.f32.gmra.mxu0 %v383
        %v414 = vpop.f32.mrf.mxu0
        %v415 = vadd.f32 0.0, %v414
        %416 = vmatmul.f32.gmra.mxu0 %v386
        %v417 = vpop.f32.mrf.mxu0
        %v418 = vadd.f32 0.0, %v417
        %419 = vdwg.mxu0
        %420 = vmatpush.msra.mxu0 0.0
        %421 = vmatpush.msra.mxu0 %v367
        %422 = vmatpush.msra.mxu0 %v360
        %423 = vmatpush.msra.mxu0 %v353
        %424 = vmatpush.msra.mxu0 %v346
        %425 = vmatpush.msra.mxu0 %v339
        %426 = vmatpush.msra.mxu0 %v332
        %427 = vmatpush.msra.mxu0 %v325
        %428 = vmatpush.msra.mxu0 %v318
        %429 = vmatpush.msra.mxu0 %v311
        %430 = vmatpush.msra.mxu0 %v304
        %431 = vmatpush.msra.mxu0 %v297
        %432 = vmatpush.msra.mxu0 %v290
        %433 = vmatpush.msra.mxu0 %v283
        %434 = vmatpush.msra.mxu0 %v276
        %435 = vmatpush.msra.mxu0 %v269
        %436 = vmatmul.f32.gmra.mxu0 %v374
        %v437 = vpop.f32.mrf.mxu0
        %v438 = vadd.f32 0.0, %v437
        %439 = vmatmul.f32.gmra.mxu0 %v377
        %v440 = vpop.f32.mrf.mxu0
        %v441 = vadd.f32 0.0, %v440
        %442 = vmatmul.f32.gmra.mxu0 %v380
        %v443 = vpop.f32.mrf.mxu0
        %v444 = vadd.f32 0.0, %v443
        %445 = vmatmul.f32.gmra.mxu0 %v383
        %v446 = vpop.f32.mrf.mxu0
        %v447 = vadd.f32 0.0, %v446
        %448 = vmatmul.f32.gmra.mxu0 %v386
        %v449 = vpop.f32.mrf.mxu0
        %v450 = vadd.f32 0.0, %v449
        %451 = vdwg.mxu0
        %452 = vmatpush.msra.mxu0 0.0
        %453 = vmatpush.msra.mxu0 %v368
        %454 = vmatpush.msra.mxu0 %v361
        %455 = vmatpush.msra.mxu0 %v354
        %456 = vmatpush.msra.mxu0 %v347
        %457 = vmatpush.msra.mxu0 %v340
        %458 = vmatpush.msra.mxu0 %v333
        %459 = vmatpush.msra.mxu0 %v326
        %460 = vmatpush.msra.mxu0 %v319
        %461 = vmatpush.msra.mxu0 %v312
        %462 = vmatpush.msra.mxu0 %v305
        %463 = vmatpush.msra.mxu0 %v298
        %464 = vmatpush.msra.mxu0 %v291
        %465 = vmatpush.msra.mxu0 %v284
        %466 = vmatpush.msra.mxu0 %v277
        %467 = vmatpush.msra.mxu0 %v270
        %468 = vmatmul.f32.gmra.mxu0 %v374
        %v469 = vpop.f32.mrf.mxu0
        %v470 = vadd.f32 0.0, %v469
        %471 = vmatmul.f32.gmra.mxu0 %v377
        %v472 = vpop.f32.mrf.mxu0
        %v473 = vadd.f32 0.0, %v472
        %474 = vmatmul.f32.gmra.mxu0 %v380
        %v475 = vpop.f32.mrf.mxu0
        %v476 = vadd.f32 0.0, %v475
        %477 = vmatmul.f32.gmra.mxu0 %v383
        %v478 = vpop.f32.mrf.mxu0
        %v479 = vadd.f32 0.0, %v478
        %480 = vmatmul.f32.gmra.mxu0 %v386
        %v481 = vpop.f32.mrf.mxu0
        %v482 = vadd.f32 0.0, %v481
        %483 = vdwg.mxu0
        %484 = vmatpush.msra.mxu0 0.0
        %485 = vmatpush.msra.mxu0 %v369
        %486 = vmatpush.msra.mxu0 %v362
        %487 = vmatpush.msra.mxu0 %v355
        %488 = vmatpush.msra.mxu0 %v348
        %489 = vmatpush.msra.mxu0 %v341
        %490 = vmatpush.msra.mxu0 %v334
        %491 = vmatpush.msra.mxu0 %v327
        %492 = vmatpush.msra.mxu0 %v320
        %493 = vmatpush.msra.mxu0 %v313
        %494 = vmatpush.msra.mxu0 %v306
        %495 = vmatpush.msra.mxu0 %v299
        %496 = vmatpush.msra.mxu0 %v292
        %497 = vmatpush.msra.mxu0 %v285
        %498 = vmatpush.msra.mxu0 %v278
        %499 = vmatpush.msra.mxu0 %v271
        %500 = vmatmul.f32.gmra.mxu0 %v374
        %v501 = vpop.f32.mrf.mxu0
        %v502 = vadd.f32 0.0, %v501
        %503 = vmatmul.f32.gmra.mxu0 %v377
        %v504 = vpop.f32.mrf.mxu0
        %v505 = vadd.f32 0.0, %v504
        %506 = vmatmul.f32.gmra.mxu0 %v380
        %v507 = vpop.f32.mrf.mxu0
        %v508 = vadd.f32 0.0, %v507
        %509 = vmatmul.f32.gmra.mxu0 %v383
        %v510 = vpop.f32.mrf.mxu0
        %v511 = vadd.f32 0.0, %v510
        %512 = vmatmul.f32.gmra.mxu0 %v386
        %v513 = vpop.f32.mrf.mxu0
        %v514 = vadd.f32 0.0, %v513
        %515 = vdwg.mxu0
        %516 = vmatpush.msra.mxu0 0.0
        %517 = vmatpush.msra.mxu0 %v370
        %518 = vmatpush.msra.mxu0 %v363
        %519 = vmatpush.msra.mxu0 %v356
        %520 = vmatpush.msra.mxu0 %v349
        %521 = vmatpush.msra.mxu0 %v342
        %522 = vmatpush.msra.mxu0 %v335
        %523 = vmatpush.msra.mxu0 %v328
        %524 = vmatpush.msra.mxu0 %v321
        %525 = vmatpush.msra.mxu0 %v314
        %526 = vmatpush.msra.mxu0 %v307
        %527 = vmatpush.msra.mxu0 %v300
        %528 = vmatpush.msra.mxu0 %v293
        %529 = vmatpush.msra.mxu0 %v286
        %530 = vmatpush.msra.mxu0 %v279
        %531 = vmatpush.msra.mxu0 %v272
        %532 = vmatmul.f32.gmra.mxu0 %v374
        %v533 = vpop.f32.mrf.mxu0
        %v534 = vadd.f32 0.0, %v533
        %535 = vmatmul.f32.gmra.mxu0 %v377
        %v536 = vpop.f32.mrf.mxu0
        %v537 = vadd.f32 0.0, %v536
        %538 = vmatmul.f32.gmra.mxu0 %v380
        %v539 = vpop.f32.mrf.mxu0
        %v540 = vadd.f32 0.0, %v539
        %541 = vmatmul.f32.gmra.mxu0 %v383
        %v542 = vpop.f32.mrf.mxu0
        %v543 = vadd.f32 0.0, %v542
        %544 = vmatmul.f32.gmra.mxu0 %v386
        %v545 = vpop.f32.mrf.mxu0
        %v546 = vadd.f32 0.0, %v545
        %547 = vdwg.mxu0
        %548 = vmatpush.msra.mxu0 0.0
        %549 = vmatpush.msra.mxu0 %v371
        %550 = vmatpush.msra.mxu0 %v364
        %551 = vmatpush.msra.mxu0 %v357
        %552 = vmatpush.msra.mxu0 %v350
        %553 = vmatpush.msra.mxu0 %v343
        %554 = vmatpush.msra.mxu0 %v336
        %555 = vmatpush.msra.mxu0 %v329
        %556 = vmatpush.msra.mxu0 %v322
        %557 = vmatpush.msra.mxu0 %v315
        %558 = vmatpush.msra.mxu0 %v308
        %559 = vmatpush.msra.mxu0 %v301
        %560 = vmatpush.msra.mxu0 %v294
        %561 = vmatpush.msra.mxu0 %v287
        %562 = vmatpush.msra.mxu0 %v280
        %563 = vmatpush.msra.mxu0 %v273
        %564 = vmatmul.f32.gmra.mxu0 %v374
        %v565 = vpop.f32.mrf.mxu0
        %v566 = vadd.f32 0.0, %v565
        %567 = vmatmul.f32.gmra.mxu0 %v377
        %v568 = vpop.f32.mrf.mxu0
        %v569 = vadd.f32 0.0, %v568
        %570 = vmatmul.f32.gmra.mxu0 %v380
        %v571 = vpop.f32.mrf.mxu0
        %v572 = vadd.f32 0.0, %v571
        %573 = vmatmul.f32.gmra.mxu0 %v383
        %v574 = vpop.f32.mrf.mxu0
        %v575 = vadd.f32 0.0, %v574
        %576 = vmatmul.f32.gmra.mxu0 %v386
        %v577 = vpop.f32.mrf.mxu0
        %v578 = vadd.f32 0.0, %v577
        %579 = vdwg.mxu0
        %580 = vmatpush.msra.mxu0 0.0
        %581 = vmatpush.msra.mxu0 %v372
        %582 = vmatpush.msra.mxu0 %v365
        %583 = vmatpush.msra.mxu0 %v358
        %584 = vmatpush.msra.mxu0 %v351
        %585 = vmatpush.msra.mxu0 %v344
        %586 = vmatpush.msra.mxu0 %v337
        %587 = vmatpush.msra.mxu0 %v330
        %588 = vmatpush.msra.mxu0 %v323
        %589 = vmatpush.msra.mxu0 %v316
        %590 = vmatpush.msra.mxu0 %v309
        %591 = vmatpush.msra.mxu0 %v302
        %592 = vmatpush.msra.mxu0 %v295
        %593 = vmatpush.msra.mxu0 %v288
        %594 = vmatpush.msra.mxu0 %v281
        %595 = vmatpush.msra.mxu0 %v274
        %596 = vmatmul.f32.gmra.mxu0 %v374
        %v597 = vpop.f32.mrf.mxu0
        %v598 = vadd.f32 0.0, %v597
        %599 = vmatmul.f32.gmra.mxu0 %v377
        %v600 = vpop.f32.mrf.mxu0
        %v601 = vadd.f32 0.0, %v600
        %602 = vmatmul.f32.gmra.mxu0 %v380
        %v603 = vpop.f32.mrf.mxu0
        %v604 = vadd.f32 0.0, %v603
        %605 = vmatmul.f32.gmra.mxu0 %v383
        %v606 = vpop.f32.mrf.mxu0
        %v607 = vadd.f32 0.0, %v606
        %608 = vmatmul.f32.gmra.mxu0 %v386
        %v609 = vpop.f32.mrf.mxu0
        %v610 = vadd.f32 0.0, %v609
        %611 = vdwg.mxu0
        %p612 = scmp.eq.s32.totalorder %s16, 0
        // Predicated region
        $region37: #{tpu_custom_call.1} parent=35 // pred_check
          %p613 = pneg %p612
        $region38: #{tpu_custom_call.1} parent=35 // pred_check_branch
          %615 = sbr.rel (%p613) target = $region40
        $region39: #{tpu_custom_call.1} parent=35 // pred_region
          %616 = vst [vmem:[#allocation2] sm:$0xff] %v406
          %617 = vst [vmem:[#allocation2 + $0x8] sm:$0xff] %v438
          %618 = vst [vmem:[#allocation2 + $0x10] sm:$0xff] %v470
          %619 = vst [vmem:[#allocation2 + $0x18] sm:$0xff] %v502
          %620 = vst [vmem:[#allocation2 + $0x20] sm:$0xff] %v534
          %621 = vst [vmem:[#allocation2 + $0x28] sm:$0xff] %v566
          %vm622 = vcmask 130048
          %623 = vst.msk [vmem:[#allocation2 + $0x30] sm:$0xff] %vm622, %v598
          %624 = vst [vmem:[#allocation2 + $0x38] sm:$0xff] %v409
          %625 = vst [vmem:[#allocation2 + $0x40] sm:$0xff] %v441
          %626 = vst [vmem:[#allocation2 + $0x48] sm:$0xff] %v473
          %627 = vst [vmem:[#allocation2 + $0x50] sm:$0xff] %v505
          %628 = vst [vmem:[#allocation2 + $0x58] sm:$0xff] %v537
          %629 = vst [vmem:[#allocation2 + $0x60] sm:$0xff] %v569
          %630 = vst.msk [vmem:[#allocation2 + $0x68] sm:$0xff] %vm622, %v601
          %631 = vst [vmem:[#allocation2 + $0x70] sm:$0xff] %v412
          %632 = vst [vmem:[#allocation2 + $0x78] sm:$0xff] %v444
          %633 = vst [vmem:[#allocation2 + $0x80] sm:$0xff] %v476
          %634 = vst [vmem:[#allocation2 + $0x88] sm:$0xff] %v508
          %635 = vst [vmem:[#allocation2 + $0x90] sm:$0xff] %v540
          %636 = vst [vmem:[#allocation2 + $0x98] sm:$0xff] %v572
          %637 = vst.msk [vmem:[#allocation2 + $0xa0] sm:$0xff] %vm622, %v604
          %638 = vst [vmem:[#allocation2 + $0xa8] sm:$0xff] %v415
          %639 = vst [vmem:[#allocation2 + $0xb0] sm:$0xff] %v447
          %640 = vst [vmem:[#allocation2 + $0xb8] sm:$0xff] %v479
          %641 = vst [vmem:[#allocation2 + $0xc0] sm:$0xff] %v511
          %642 = vst [vmem:[#allocation2 + $0xc8] sm:$0xff] %v543
          %643 = vst [vmem:[#allocation2 + $0xd0] sm:$0xff] %v575
          %644 = vst.msk [vmem:[#allocation2 + $0xd8] sm:$0xff] %vm622, %v607
          %645 = vst [vmem:[#allocation2 + $0xe0] sm:$0xff] %v418
          %646 = vst [vmem:[#allocation2 + $0xe8] sm:$0xff] %v450
          %647 = vst [vmem:[#allocation2 + $0xf0] sm:$0xff] %v482
          %648 = vst [vmem:[#allocation2 + $0xf8] sm:$0xff] %v514
          %649 = vst [vmem:[#allocation2 + $0x100] sm:$0xff] %v546
          %650 = vst [vmem:[#allocation2 + $0x108] sm:$0xff] %v578
          %651 = vst.msk [vmem:[#allocation2 + $0x110] sm:$0xff] %vm622, %v610
        $region40: #{tpu_custom_call.1} parent=35 // pred_fallthru
          _
        %p652 = scmp.gt.s32.totalorder %s16, 0
        // Predicated region
        $region41: #{tpu_custom_call.1} parent=35 // pred_check
          %p653 = pneg %p652
        $region42: #{tpu_custom_call.1} parent=35 // pred_check_branch
          %655 = sbr.rel (%p653) target = $region44
        $region43: #{tpu_custom_call.1} parent=35 // pred_region
          %v656 = vld [vmem:[#allocation2] sm:$0xff]
          %v657 = vld [vmem:[#allocation2 + $0x8] sm:$0xff]
          %v658 = vld [vmem:[#allocation2 + $0x10] sm:$0xff]
          %v659 = vld [vmem:[#allocation2 + $0x18] sm:$0xff]
          %v660 = vld [vmem:[#allocation2 + $0x20] sm:$0xff]
          %v661 = vld [vmem:[#allocation2 + $0x28] sm:$0xff]
          %v662 = vld [vmem:[#allocation2 + $0x30] sm:$0xff]
          %v663 = vld [vmem:[#allocation2 + $0x38] sm:$0xff]
          %v664 = vld [vmem:[#allocation2 + $0x40] sm:$0xff]
          %v665 = vld [vmem:[#allocation2 + $0x48] sm:$0xff]
          %v666 = vld [vmem:[#allocation2 + $0x50] sm:$0xff]
          %v667 = vld [vmem:[#allocation2 + $0x58] sm:$0xff]
          %v668 = vld [vmem:[#allocation2 + $0x60] sm:$0xff]
          %v669 = vld [vmem:[#allocation2 + $0x68] sm:$0xff]
          %v670 = vld [vmem:[#allocation2 + $0x70] sm:$0xff]
          %v671 = vld [vmem:[#allocation2 + $0x78] sm:$0xff]
          %v672 = vld [vmem:[#allocation2 + $0x80] sm:$0xff]
          %v673 = vld [vmem:[#allocation2 + $0x88] sm:$0xff]
          %v674 = vld [vmem:[#allocation2 + $0x90] sm:$0xff]
          %v675 = vld [vmem:[#allocation2 + $0x98] sm:$0xff]
          %v676 = vld [vmem:[#allocation2 + $0xa0] sm:$0xff]
          %v677 = vld [vmem:[#allocation2 + $0xa8] sm:$0xff]
          %v678 = vld [vmem:[#allocation2 + $0xb0] sm:$0xff]
          %v679 = vld [vmem:[#allocation2 + $0xb8] sm:$0xff]
          %v680 = vld [vmem:[#allocation2 + $0xc0] sm:$0xff]
          %v681 = vld [vmem:[#allocation2 + $0xc8] sm:$0xff]
          %v682 = vld [vmem:[#allocation2 + $0xd0] sm:$0xff]
          %v683 = vld [vmem:[#allocation2 + $0xd8] sm:$0xff]
          %v684 = vld [vmem:[#allocation2 + $0xe0] sm:$0xff]
          %v685 = vld [vmem:[#allocation2 + $0xe8] sm:$0xff]
          %v686 = vld [vmem:[#allocation2 + $0xf0] sm:$0xff]
          %v687 = vld [vmem:[#allocation2 + $0xf8] sm:$0xff]
          %v688 = vld [vmem:[#allocation2 + $0x100] sm:$0xff]
          %v689 = vld [vmem:[#allocation2 + $0x108] sm:$0xff]
          %v690 = vld [vmem:[#allocation2 + $0x110] sm:$0xff]
          %v691 = vadd.f32 %v656, %v406
          %v692 = vadd.f32 %v657, %v438
          %v693 = vadd.f32 %v658, %v470
          %v694 = vadd.f32 %v659, %v502
          %v695 = vadd.f32 %v660, %v534
          %v696 = vadd.f32 %v661, %v566
          %v697 = vadd.f32 %v662, %v598
          %v698 = vadd.f32 %v663, %v409
          %v699 = vadd.f32 %v664, %v441
          %v700 = vadd.f32 %v665, %v473
          %v701 = vadd.f32 %v666, %v505
          %v702 = vadd.f32 %v667, %v537
          %v703 = vadd.f32 %v668, %v569
          %v704 = vadd.f32 %v669, %v601
          %v705 = vadd.f32 %v670, %v412
          %v706 = vadd.f32 %v671, %v444
          %v707 = vadd.f32 %v672, %v476
          %v708 = vadd.f32 %v673, %v508
          %v709 = vadd.f32 %v674, %v540
          %v710 = vadd.f32 %v675, %v572
          %v711 = vadd.f32 %v676, %v604
          %v712 = vadd.f32 %v677, %v415
          %v713 = vadd.f32 %v678, %v447
          %v714 = vadd.f32 %v679, %v479
          %v715 = vadd.f32 %v680, %v511
          %v716 = vadd.f32 %v681, %v543
          %v717 = vadd.f32 %v682, %v575
          %v718 = vadd.f32 %v683, %v607
          %v719 = vadd.f32 %v684, %v418
          %v720 = vadd.f32 %v685, %v450
          %v721 = vadd.f32 %v686, %v482
          %v722 = vadd.f32 %v687, %v514
          %v723 = vadd.f32 %v688, %v546
          %v724 = vadd.f32 %v689, %v578
          %v725 = vadd.f32 %v690, %v610
          %726 = vst [vmem:[#allocation2] sm:$0xff] %v691
          %727 = vst [vmem:[#allocation2 + $0x8] sm:$0xff] %v692
          %728 = vst [vmem:[#allocation2 + $0x10] sm:$0xff] %v693
          %729 = vst [vmem:[#allocation2 + $0x18] sm:$0xff] %v694
          %730 = vst [vmem:[#allocation2 + $0x20] sm:$0xff] %v695
          %731 = vst [vmem:[#allocation2 + $0x28] sm:$0xff] %v696
          %vm732 = vcmask 130048
          %733 = vst.msk [vmem:[#allocation2 + $0x30] sm:$0xff] %vm732, %v697
          %734 = vst [vmem:[#allocation2 + $0x38] sm:$0xff] %v698
          %735 = vst [vmem:[#allocation2 + $0x40] sm:$0xff] %v699
          %736 = vst [vmem:[#allocation2 + $0x48] sm:$0xff] %v700
          %737 = vst [vmem:[#allocation2 + $0x50] sm:$0xff] %v701
          %738 = vst [vmem:[#allocation2 + $0x58] sm:$0xff] %v702
          %739 = vst [vmem:[#allocation2 + $0x60] sm:$0xff] %v703
          %740 = vst.msk [vmem:[#allocation2 + $0x68] sm:$0xff] %vm732, %v704
          %741 = vst [vmem:[#allocation2 + $0x70] sm:$0xff] %v705
          %742 = vst [vmem:[#allocation2 + $0x78] sm:$0xff] %v706
          %743 = vst [vmem:[#allocation2 + $0x80] sm:$0xff] %v707
          %744 = vst [vmem:[#allocation2 + $0x88] sm:$0xff] %v708
          %745 = vst [vmem:[#allocation2 + $0x90] sm:$0xff] %v709
          %746 = vst [vmem:[#allocation2 + $0x98] sm:$0xff] %v710
          %747 = vst.msk [vmem:[#allocation2 + $0xa0] sm:$0xff] %vm732, %v711
          %748 = vst [vmem:[#allocation2 + $0xa8] sm:$0xff] %v712
          %749 = vst [vmem:[#allocation2 + $0xb0] sm:$0xff] %v713
          %750 = vst [vmem:[#allocation2 + $0xb8] sm:$0xff] %v714
          %751 = vst [vmem:[#allocation2 + $0xc0] sm:$0xff] %v715
          %752 = vst [vmem:[#allocation2 + $0xc8] sm:$0xff] %v716
          %753 = vst [vmem:[#allocation2 + $0xd0] sm:$0xff] %v717
          %754 = vst.msk [vmem:[#allocation2 + $0xd8] sm:$0xff] %vm732, %v718
          %755 = vst [vmem:[#allocation2 + $0xe0] sm:$0xff] %v719
          %756 = vst [vmem:[#allocation2 + $0xe8] sm:$0xff] %v720
          %757 = vst [vmem:[#allocation2 + $0xf0] sm:$0xff] %v721
          %758 = vst [vmem:[#allocation2 + $0xf8] sm:$0xff] %v722
          %759 = vst [vmem:[#allocation2 + $0x100] sm:$0xff] %v723
          %760 = vst [vmem:[#allocation2 + $0x108] sm:$0xff] %v724
          %761 = vst.msk [vmem:[#allocation2 + $0x110] sm:$0xff] %vm732, %v725
        $region44: #{tpu_custom_call.1} parent=35 // pred_fallthru
          _
        %p762 = scmp.eq.s32.totalorder %s16, 1
        // Predicated region
        $region45: #{tpu_custom_call.1} parent=35 // pred_check
          %p763 = pneg %p762
        $region46: #{tpu_custom_call.1} parent=35 // pred_check_branch
          %765 = sbr.rel (%p763) target = $region48
        $region47: #{tpu_custom_call.1} parent=35 // pred_region
          %v766 = vld [vmem:[#allocation2] sm:$0xff]
          %v767 = vld [vmem:[#allocation2 + $0x8] sm:$0xff]
          %v768 = vld [vmem:[#allocation2 + $0x10] sm:$0xff]
          %v769 = vld [vmem:[#allocation2 + $0x18] sm:$0xff]
          %v770 = vld [vmem:[#allocation2 + $0x20] sm:$0xff]
          %v771 = vld [vmem:[#allocation2 + $0x28] sm:$0xff]
          %v772 = vld [vmem:[#allocation2 + $0x30] sm:$0xff]
          %v773 = vadd.f32 %v766, %v767
          %v774 = vadd.f32 %v773, %v768
          %v775 = vadd.f32 %v774, %v769
          %v776 = vadd.f32 %v775, %v770
          %v777 = vadd.f32 %v776, %v771
          %vm778 = vcmask 130048
          %v779 = vsel %vm778, %v772, 0.0
          %v780 = vadd.f32 %v777, %v779
          %781 = vadd.xlane.f32.xlu0 %v780
          %v782 = vpop.xlane.xlu0 %781
          %v783 = vmul.f32 %v782, 0.0012755102
          %v784 = vsub.f32 %v766, %v783
          %v785 = vsub.f32 %v767, %v783
          %v786 = vsub.f32 %v768, %v783
          %v787 = vsub.f32 %v769, %v783
          %v788 = vsub.f32 %v770, %v783
          %v789 = vsub.f32 %v771, %v783
          %v790 = vsub.f32 %v772, %v783
          %v791 = vmul.f32 %v784, %v784
          %v792 = vmul.f32 %v785, %v785
          %v793 = vmul.f32 %v786, %v786
          %v794 = vmul.f32 %v787, %v787
          %v795 = vmul.f32 %v788, %v788
          %v796 = vmul.f32 %v789, %v789
          %v797 = vmul.f32 %v790, %v790
          %v798 = vadd.f32 %v791, %v792
          %v799 = vadd.f32 %v798, %v793
          %v800 = vadd.f32 %v799, %v794
          %v801 = vadd.f32 %v800, %v795
          %v802 = vadd.f32 %v801, %v796
          %v803 = vsel %vm778, %v797, 0.0
          %v804 = vadd.f32 %v802, %v803
          %805 = vadd.xlane.f32.xlu0 %v804
          %v806 = vpop.xlane.xlu0 %805
          %v807 = vmul.f32 %v806, 0.0012755102
          %v808 = vld [vmem:[%s3] sm:$0xff]
          %v809 = vadd.f32 %v807, 1e-05
          %v810 = vrsqrt.pop %v809
          %v811 = vmul.f32 %v810, %v809
          %v812 = vmul.f32 %v811, %v810
          %v813 = vmul.f32 0.5, %v812
          %v814 = vsub.f32 1.5, %v813
          %v815 = vmul.f32 %v810, %v814
          %vm816 = vweird.f32 %v809
          %vm817 = vweird.f32 %v810
          %vm818 = vmor %vm816, %vm817
          %v819 = vsel %vm818, %v810, %v815
          %v820 = vmul.f32 %v808, %v819
          %822 = vset.pattern.permute.xlu0 0
          %823 = vperm.xlu0 %822, %v820
          %v824 = vpop.permute.xlu0 %823
          %v826 = vmul.f32 %v824, %v784
          %v827 = vmul.f32 %v824, %v785
          %v828 = vmul.f32 %v824, %v786
          %v829 = vmul.f32 %v824, %v787
          %v830 = vmul.f32 %v824, %v788
          %v831 = vmul.f32 %v824, %v789
          %v832 = vmul.f32 %v824, %v790
          %834 = vset.pattern.permute.xlu0 1
          %835 = vperm.xlu0 %834, %v808
          %v836 = vpop.permute.xlu0 %835
          %v838 = vadd.f32 %v826, %v836
          %v839 = vadd.f32 %v827, %v836
          %v840 = vadd.f32 %v828, %v836
          %v841 = vadd.f32 %v829, %v836
          %v842 = vadd.f32 %v830, %v836
          %v843 = vadd.f32 %v831, %v836
          %v844 = vadd.f32 %v832, %v836
          %845 = vst [vmem:[#allocation2] sm:$0xff] %v838
          %846 = vst [vmem:[#allocation2 + $0x8] sm:$0xff] %v839
          %847 = vst [vmem:[#allocation2 + $0x10] sm:$0xff] %v840
          %848 = vst [vmem:[#allocation2 + $0x18] sm:$0xff] %v841
          %849 = vst [vmem:[#allocation2 + $0x20] sm:$0xff] %v842
          %850 = vst [vmem:[#allocation2 + $0x28] sm:$0xff] %v843
          %851 = vst.msk [vmem:[#allocation2 + $0x30] sm:$0xff] %vm778, %v844
          %v852 = vld [vmem:[#allocation2 + $0x38] sm:$0xff]
          %v853 = vld [vmem:[#allocation2 + $0x40] sm:$0xff]
          %v854 = vld [vmem:[#allocation2 + $0x48] sm:$0xff]
          %v855 = vld [vmem:[#allocation2 + $0x50] sm:$0xff]
          %v856 = vld [vmem:[#allocation2 + $0x58] sm:$0xff]
          %v857 = vld [vmem:[#allocation2 + $0x60] sm:$0xff]
          %v858 = vld [vmem:[#allocation2 + $0x68] sm:$0xff]
          %v859 = vadd.f32 %v852, %v853
          %v860 = vadd.f32 %v859, %v854
          %v861 = vadd.f32 %v860, %v855
          %v862 = vadd.f32 %v861, %v856
          %v863 = vadd.f32 %v862, %v857
          %v864 = vsel %vm778, %v858, 0.0
          %v865 = vadd.f32 %v863, %v864
          %866 = vadd.xlane.f32.xlu0 %v865
          %v867 = vpop.xlane.xlu0 %866
          %v868 = vmul.f32 %v867, 0.0012755102
          %v869 = vsub.f32 %v852, %v868
          %v870 = vsub.f32 %v853, %v868
          %v871 = vsub.f32 %v854, %v868
          %v872 = vsub.f32 %v855, %v868
          %v873 = vsub.f32 %v856, %v868
          %v874 = vsub.f32 %v857, %v868
          %v875 = vsub.f32 %v858, %v868
          %v876 = vmul.f32 %v869, %v869
          %v877 = vmul.f32 %v870, %v870
          %v878 = vmul.f32 %v871, %v871
          %v879 = vmul.f32 %v872, %v872
          %v880 = vmul.f32 %v873, %v873
          %v881 = vmul.f32 %v874, %v874
          %v882 = vmul.f32 %v875, %v875
          %v883 = vadd.f32 %v876, %v877
          %v884 = vadd.f32 %v883, %v878
          %v885 = vadd.f32 %v884, %v879
          %v886 = vadd.f32 %v885, %v880
          %v887 = vadd.f32 %v886, %v881
          %v888 = vsel %vm778, %v882, 0.0
          %v889 = vadd.f32 %v887, %v888
          %890 = vadd.xlane.f32.xlu0 %v889
          %v891 = vpop.xlane.xlu0 %890
          %v892 = vmul.f32 %v891, 0.0012755102
          %v893 = vld [vmem:[%s3 + $0x8] sm:$0xff]
          %v894 = vadd.f32 %v892, 1e-05
          %v895 = vrsqrt.pop %v894
          %v896 = vmul.f32 %v895, %v894
          %v897 = vmul.f32 %v896, %v895
          %v898 = vmul.f32 0.5, %v897
          %v899 = vsub.f32 1.5, %v898
          %v900 = vmul.f32 %v895, %v899
          %vm901 = vweird.f32 %v894
          %vm902 = vweird.f32 %v895
          %vm903 = vmor %vm901, %vm902
          %v904 = vsel %vm903, %v895, %v900
          %v905 = vmul.f32 %v893, %v904
          %907 = vset.pattern.permute.xlu0 0
          %908 = vperm.xlu0 %907, %v905
          %v909 = vpop.permute.xlu0 %908
          %v911 = vmul.f32 %v909, %v869
          %v912 = vmul.f32 %v909, %v870
          %v913 = vmul.f32 %v909, %v871
          %v914 = vmul.f32 %v909, %v872
          %v915 = vmul.f32 %v909, %v873
          %v916 = vmul.f32 %v909, %v874
          %v917 = vmul.f32 %v909, %v875
          %919 = vset.pattern.permute.xlu0 1
          %920 = vperm.xlu0 %919, %v893
          %v921 = vpop.permute.xlu0 %920
          %v923 = vadd.f32 %v911, %v921
          %v924 = vadd.f32 %v912, %v921
          %v925 = vadd.f32 %v913, %v921
          %v926 = vadd.f32 %v914, %v921
          %v927 = vadd.f32 %v915, %v921
          %v928 = vadd.f32 %v916, %v921
          %v929 = vadd.f32 %v917, %v921
          %930 = vst [vmem:[#allocation2 + $0x38] sm:$0xff] %v923
          %931 = vst [vmem:[#allocation2 + $0x40] sm:$0xff] %v924
          %932 = vst [vmem:[#allocation2 + $0x48] sm:$0xff] %v925
          %933 = vst [vmem:[#allocation2 + $0x50] sm:$0xff] %v926
          %934 = vst [vmem:[#allocation2 + $0x58] sm:$0xff] %v927
          %935 = vst [vmem:[#allocation2 + $0x60] sm:$0xff] %v928
          %936 = vst.msk [vmem:[#allocation2 + $0x68] sm:$0xff] %vm778, %v929
          %v937 = vld [vmem:[#allocation2 + $0x70] sm:$0xff]
          %v938 = vld [vmem:[#allocation2 + $0x78] sm:$0xff]
          %v939 = vld [vmem:[#allocation2 + $0x80] sm:$0xff]
          %v940 = vld [vmem:[#allocation2 + $0x88] sm:$0xff]
          %v941 = vld [vmem:[#allocation2 + $0x90] sm:$0xff]
          %v942 = vld [vmem:[#allocation2 + $0x98] sm:$0xff]
          %v943 = vld [vmem:[#allocation2 + $0xa0] sm:$0xff]
          %v944 = vadd.f32 %v937, %v938
          %v945 = vadd.f32 %v944, %v939
          %v946 = vadd.f32 %v945, %v940
          %v947 = vadd.f32 %v946, %v941
          %v948 = vadd.f32 %v947, %v942
          %v949 = vsel %vm778, %v943, 0.0
          %v950 = vadd.f32 %v948, %v949
          %951 = vadd.xlane.f32.xlu0 %v950
          %v952 = vpop.xlane.xlu0 %951
          %v953 = vmul.f32 %v952, 0.0012755102
          %v954 = vsub.f32 %v937, %v953
          %v955 = vsub.f32 %v938, %v953
          %v956 = vsub.f32 %v939, %v953
          %v957 = vsub.f32 %v940, %v953
          %v958 = vsub.f32 %v941, %v953
          %v959 = vsub.f32 %v942, %v953
          %v960 = vsub.f32 %v943, %v953
          %v961 = vmul.f32 %v954, %v954
          %v962 = vmul.f32 %v955, %v955
          %v963 = vmul.f32 %v956, %v956
          %v964 = vmul.f32 %v957, %v957
          %v965 = vmul.f32 %v958, %v958
          %v966 = vmul.f32 %v959, %v959
          %v967 = vmul.f32 %v960, %v960
          %v968 = vadd.f32 %v961, %v962
          %v969 = vadd.f32 %v968, %v963
          %v970 = vadd.f32 %v969, %v964
          %v971 = vadd.f32 %v970, %v965
          %v972 = vadd.f32 %v971, %v966
          %v973 = vsel %vm778, %v967, 0.0
          %v974 = vadd.f32 %v972, %v973
          %975 = vadd.xlane.f32.xlu0 %v974
          %v976 = vpop.xlane.xlu0 %975
          %v977 = vmul.f32 %v976, 0.0012755102
          %v978 = vld [vmem:[%s3 + $0x10] sm:$0xff]
          %v979 = vadd.f32 %v977, 1e-05
          %v980 = vrsqrt.pop %v979
          %v981 = vmul.f32 %v980, %v979
          %v982 = vmul.f32 %v981, %v980
          %v983 = vmul.f32 0.5, %v982
          %v984 = vsub.f32 1.5, %v983
          %v985 = vmul.f32 %v980, %v984
          %vm986 = vweird.f32 %v979
          %vm987 = vweird.f32 %v980
          %vm988 = vmor %vm986, %vm987
          %v989 = vsel %vm988, %v980, %v985
          %v990 = vmul.f32 %v978, %v989
          %992 = vset.pattern.permute.xlu0 0
          %993 = vperm.xlu0 %992, %v990
          %v994 = vpop.permute.xlu0 %993
          %v996 = vmul.f32 %v994, %v954
          %v997 = vmul.f32 %v994, %v955
          %v998 = vmul.f32 %v994, %v956
          %v999 = vmul.f32 %v994, %v957
          %v1000 = vmul.f32 %v994, %v958
          %v1001 = vmul.f32 %v994, %v959
          %v1002 = vmul.f32 %v994, %v960
          %1004 = vset.pattern.permute.xlu0 1
          %1005 = vperm.xlu0 %1004, %v978
          %v1006 = vpop.permute.xlu0 %1005
          %v1008 = vadd.f32 %v996, %v1006
          %v1009 = vadd.f32 %v997, %v1006
          %v1010 = vadd.f32 %v998, %v1006
          %v1011 = vadd.f32 %v999, %v1006
          %v1012 = vadd.f32 %v1000, %v1006
          %v1013 = vadd.f32 %v1001, %v1006
          %v1014 = vadd.f32 %v1002, %v1006
          %1015 = vst [vmem:[#allocation2 + $0x70] sm:$0xff] %v1008
          %1016 = vst [vmem:[#allocation2 + $0x78] sm:$0xff] %v1009
          %1017 = vst [vmem:[#allocation2 + $0x80] sm:$0xff] %v1010
          %1018 = vst [vmem:[#allocation2 + $0x88] sm:$0xff] %v1011
          %1019 = vst [vmem:[#allocation2 + $0x90] sm:$0xff] %v1012
          %1020 = vst [vmem:[#allocation2 + $0x98] sm:$0xff] %v1013
          %1021 = vst.msk [vmem:[#allocation2 + $0xa0] sm:$0xff] %vm778, %v1014
          %v1022 = vld [vmem:[#allocation2 + $0xa8] sm:$0xff]
          %v1023 = vld [vmem:[#allocation2 + $0xb0] sm:$0xff]
          %v1024 = vld [vmem:[#allocation2 + $0xb8] sm:$0xff]
          %v1025 = vld [vmem:[#allocation2 + $0xc0] sm:$0xff]
          %v1026 = vld [vmem:[#allocation2 + $0xc8] sm:$0xff]
          %v1027 = vld [vmem:[#allocation2 + $0xd0] sm:$0xff]
          %v1028 = vld [vmem:[#allocation2 + $0xd8] sm:$0xff]
          %v1029 = vadd.f32 %v1022, %v1023
          %v1030 = vadd.f32 %v1029, %v1024
          %v1031 = vadd.f32 %v1030, %v1025
          %v1032 = vadd.f32 %v1031, %v1026
          %v1033 = vadd.f32 %v1032, %v1027
          %v1034 = vsel %vm778, %v1028, 0.0
          %v1035 = vadd.f32 %v1033, %v1034
          %1036 = vadd.xlane.f32.xlu0 %v1035
          %v1037 = vpop.xlane.xlu0 %1036
          %v1038 = vmul.f32 %v1037, 0.0012755102
          %v1039 = vsub.f32 %v1022, %v1038
          %v1040 = vsub.f32 %v1023, %v1038
          %v1041 = vsub.f32 %v1024, %v1038
          %v1042 = vsub.f32 %v1025, %v1038
          %v1043 = vsub.f32 %v1026, %v1038
          %v1044 = vsub.f32 %v1027, %v1038
          %v1045 = vsub.f32 %v1028, %v1038
          %v1046 = vmul.f32 %v1039, %v1039
          %v1047 = vmul.f32 %v1040, %v1040
          %v1048 = vmul.f32 %v1041, %v1041
          %v1049 = vmul.f32 %v1042, %v1042
          %v1050 = vmul.f32 %v1043, %v1043
          %v1051 = vmul.f32 %v1044, %v1044
          %v1052 = vmul.f32 %v1045, %v1045
          %v1053 = vadd.f32 %v1046, %v1047
          %v1054 = vadd.f32 %v1053, %v1048
          %v1055 = vadd.f32 %v1054, %v1049
          %v1056 = vadd.f32 %v1055, %v1050
          %v1057 = vadd.f32 %v1056, %v1051
          %v1058 = vsel %vm778, %v1052, 0.0
          %v1059 = vadd.f32 %v1057, %v1058
          %1060 = vadd.xlane.f32.xlu0 %v1059
          %v1061 = vpop.xlane.xlu0 %1060
          %v1062 = vmul.f32 %v1061, 0.0012755102
          %v1063 = vld [vmem:[%s3 + $0x18] sm:$0xff]
          %v1064 = vadd.f32 %v1062, 1e-05
          %v1065 = vrsqrt.pop %v1064
          %v1066 = vmul.f32 %v1065, %v1064
          %v1067 = vmul.f32 %v1066, %v1065
          %v1068 = vmul.f32 0.5, %v1067
          %v1069 = vsub.f32 1.5, %v1068
          %v1070 = vmul.f32 %v1065, %v1069
          %vm1071 = vweird.f32 %v1064
          %vm1072 = vweird.f32 %v1065
          %vm1073 = vmor %vm1071, %vm1072
          %v1074 = vsel %vm1073, %v1065, %v1070
          %v1075 = vmul.f32 %v1063, %v1074
          %1077 = vset.pattern.permute.xlu0 0
          %1078 = vperm.xlu0 %1077, %v1075
          %v1079 = vpop.permute.xlu0 %1078
          %v1081 = vmul.f32 %v1079, %v1039
          %v1082 = vmul.f32 %v1079, %v1040
          %v1083 = vmul.f32 %v1079, %v1041
          %v1084 = vmul.f32 %v1079, %v1042
          %v1085 = vmul.f32 %v1079, %v1043
          %v1086 = vmul.f32 %v1079, %v1044
          %v1087 = vmul.f32 %v1079, %v1045
          %1089 = vset.pattern.permute.xlu0 1
          %1090 = vperm.xlu0 %1089, %v1063
          %v1091 = vpop.permute.xlu0 %1090
          %v1093 = vadd.f32 %v1081, %v1091
          %v1094 = vadd.f32 %v1082, %v1091
          %v1095 = vadd.f32 %v1083, %v1091
          %v1096 = vadd.f32 %v1084, %v1091
          %v1097 = vadd.f32 %v1085, %v1091
          %v1098 = vadd.f32 %v1086, %v1091
          %v1099 = vadd.f32 %v1087, %v1091
          %1100 = vst [vmem:[#allocation2 + $0xa8] sm:$0xff] %v1093
          %1101 = vst [vmem:[#allocation2 + $0xb0] sm:$0xff] %v1094
          %1102 = vst [vmem:[#allocation2 + $0xb8] sm:$0xff] %v1095
          %1103 = vst [vmem:[#allocation2 + $0xc0] sm:$0xff] %v1096
          %1104 = vst [vmem:[#allocation2 + $0xc8] sm:$0xff] %v1097
          %1105 = vst [vmem:[#allocation2 + $0xd0] sm:$0xff] %v1098
          %1106 = vst.msk [vmem:[#allocation2 + $0xd8] sm:$0xff] %vm778, %v1099
          %v1107 = vld [vmem:[#allocation2 + $0xe0] sm:$0xff]
          %v1108 = vld [vmem:[#allocation2 + $0xe8] sm:$0xff]
          %v1109 = vld [vmem:[#allocation2 + $0xf0] sm:$0xff]
          %v1110 = vld [vmem:[#allocation2 + $0xf8] sm:$0xff]
          %v1111 = vld [vmem:[#allocation2 + $0x100] sm:$0xff]
          %v1112 = vld [vmem:[#allocation2 + $0x108] sm:$0xff]
          %v1113 = vld [vmem:[#allocation2 + $0x110] sm:$0xff]
          %v1114 = vadd.f32 %v1107, %v1108
          %v1115 = vadd.f32 %v1114, %v1109
          %v1116 = vadd.f32 %v1115, %v1110
          %v1117 = vadd.f32 %v1116, %v1111
          %v1118 = vadd.f32 %v1117, %v1112
          %v1119 = vsel %vm778, %v1113, 0.0
          %v1120 = vadd.f32 %v1118, %v1119
          %1121 = vadd.xlane.f32.xlu0 %v1120
          %v1122 = vpop.xlane.xlu0 %1121
          %v1123 = vmul.f32 %v1122, 0.0012755102
          %v1124 = vsub.f32 %v1107, %v1123
          %v1125 = vsub.f32 %v1108, %v1123
          %v1126 = vsub.f32 %v1109, %v1123
          %v1127 = vsub.f32 %v1110, %v1123
          %v1128 = vsub.f32 %v1111, %v1123
          %v1129 = vsub.f32 %v1112, %v1123
          %v1130 = vsub.f32 %v1113, %v1123
          %v1131 = vmul.f32 %v1124, %v1124
          %v1132 = vmul.f32 %v1125, %v1125
          %v1133 = vmul.f32 %v1126, %v1126
          %v1134 = vmul.f32 %v1127, %v1127
          %v1135 = vmul.f32 %v1128, %v1128
          %v1136 = vmul.f32 %v1129, %v1129
          %v1137 = vmul.f32 %v1130, %v1130
          %v1138 = vadd.f32 %v1131, %v1132
          %v1139 = vadd.f32 %v1138, %v1133
          %v1140 = vadd.f32 %v1139, %v1134
          %v1141 = vadd.f32 %v1140, %v1135
          %v1142 = vadd.f32 %v1141, %v1136
          %v1143 = vsel %vm778, %v1137, 0.0
          %v1144 = vadd.f32 %v1142, %v1143
          %1145 = vadd.xlane.f32.xlu0 %v1144
          %v1146 = vpop.xlane.xlu0 %1145
          %v1147 = vmul.f32 %v1146, 0.0012755102
          %v1148 = vld [vmem:[%s3 + $0x20] sm:$0xff]
          %v1149 = vadd.f32 %v1147, 1e-05
          %v1150 = vrsqrt.pop %v1149
          %v1151 = vmul.f32 %v1150, %v1149
          %v1152 = vmul.f32 %v1151, %v1150
          %v1153 = vmul.f32 0.5, %v1152
          %v1154 = vsub.f32 1.5, %v1153
          %v1155 = vmul.f32 %v1150, %v1154
          %vm1156 = vweird.f32 %v1149
          %vm1157 = vweird.f32 %v1150
          %vm1158 = vmor %vm1156, %vm1157
          %v1159 = vsel %vm1158, %v1150, %v1155
          %v1160 = vmul.f32 %v1148, %v1159
          %1162 = vset.pattern.permute.xlu0 0
          %1163 = vperm.xlu0 %1162, %v1160
          %v1164 = vpop.permute.xlu0 %1163
          %v1166 = vmul.f32 %v1164, %v1124
          %v1167 = vmul.f32 %v1164, %v1125
          %v1168 = vmul.f32 %v1164, %v1126
          %v1169 = vmul.f32 %v1164, %v1127
          %v1170 = vmul.f32 %v1164, %v1128
          %v1171 = vmul.f32 %v1164, %v1129
          %v1172 = vmul.f32 %v1164, %v1130
          %1174 = vset.pattern.permute.xlu0 1
          %1175 = vperm.xlu0 %1174, %v1148
          %v1176 = vpop.permute.xlu0 %1175
          %v1178 = vadd.f32 %v1166, %v1176
          %v1179 = vadd.f32 %v1167, %v1176
          %v1180 = vadd.f32 %v1168, %v1176
          %v1181 = vadd.f32 %v1169, %v1176
          %v1182 = vadd.f32 %v1170, %v1176
          %v1183 = vadd.f32 %v1171, %v1176
          %v1184 = vadd.f32 %v1172, %v1176
          %1185 = vst [vmem:[#allocation2 + $0xe0] sm:$0xff] %v1178
          %1186 = vst [vmem:[#allocation2 + $0xe8] sm:$0xff] %v1179
          %1187 = vst [vmem:[#allocation2 + $0xf0] sm:$0xff] %v1180
          %1188 = vst [vmem:[#allocation2 + $0xf8] sm:$0xff] %v1181
          %1189 = vst [vmem:[#allocation2 + $0x100] sm:$0xff] %v1182
          %1190 = vst [vmem:[#allocation2 + $0x108] sm:$0xff] %v1183
          %1191 = vst.msk [vmem:[#allocation2 + $0x110] sm:$0xff] %vm778, %v1184
        $region48: #{tpu_custom_call.1} parent=35 // pred_fallthru
          _
        // Predicated region
        $region49: #{tpu_custom_call.1} parent=35 // pred_check
          %p1192 = pneg %p123
        $region50: #{tpu_custom_call.1} parent=35 // pred_check_branch
          %1194 = sbr.rel (%p1192) target = $region52
        $region51: #{tpu_custom_call.1} parent=35 // pred_region
          %1196 = vsyncadd [#allocation3], 0
          %s1197 = sshll.u32 [#allocation2], 4
          %s1198 = int_to_ptr.vmem [resolvable:$true] %s1197
          %s1199 = sshll.u32 %s4, 4
          %s1200 = int_to_ptr.hbm [resolvable:$true] %s1199
          %1205 = dma.vmem_to_hbm [thread:$0]  %s1198, 4480, %s1200, [#allocation3], 896, 896, 56
        $region52: #{tpu_custom_call.1} parent=35 // pred_fallthru
          _
        // Predicated region
        $region53: #{tpu_custom_call.1} parent=35 // pred_check
          %p1206 = pneg %p123
        $region54: #{tpu_custom_call.1} parent=35 // pred_check_branch
          %1208 = sbr.rel (%p1206) target = $region56
        $region55: #{tpu_custom_call.1} parent=35 // pred_region
          %1210 = dma.done [#allocation3], 4480
        $region56: #{tpu_custom_call.1} parent=35 // pred_fallthru
          _
      $region36: #{tpu_custom_call.1} parent=5 // pred_fallthru
        _
      %p1211 = scmp.le.s32.totalorder 2, %s11
      // Predicated region
      $region57: #{tpu_custom_call.1} parent=5 // pred_check
        %p1212 = pneg %p1211
      $region58: #{tpu_custom_call.1} parent=5 // pred_check_branch
        %1214 = sbr.rel (%p1212) target = $region60
      $region59: #{tpu_custom_call.1} parent=5 // pred_region
        %s1215 = ssub.s32 %s11, 2
      $region60: #{tpu_custom_call.1} parent=5 // pred_fallthru
        _
    $region6: #{tpu_custom_call.1} parent=1 // loop_footer
      %s15 = sadd.s32 1, %s11
    $region7: #{tpu_custom_call.1} parent=1 // loop_footer_branch
      %10 = sbr.rel target = $region3
    $region8: #{tpu_custom_call.1} parent=1 // loop_exit
      _
    %1216 = vsyncpa [#allocation3], 1
    %s1217 = scalar_lea.sflag [#allocation3], 1
    %1218 = vsyncpa %s1217, 1

</llo_original>
